<compile_context>
chip_gen: v7x
topology: tpu7x:2x2x1
jax: 0.10.0
libtpu: 0.0.40
codegen_flags: <defaults>
</compile_context>

<pallas_src>
import functools

import jax
import jax.numpy as jnp
from jax.experimental import pallas as pl
from jax.experimental.pallas import tpu as pltpu


def _round_up(a: int, b: int) -> int:
    return ((a + b - 1) // b) * b


def _conv2d_im2col_kernel(*refs, kh_size, kw_size, has_halo):
    """One (batch, row-tile) grid step of a VALID, stride-1 convolution.

    refs (has_halo=True):  xm_ref (1, T, W, C)      main input rows
                           xh_ref (1, KH-1, W, C)   halo rows below the tile
                           w_ref  (KH*KW*C, OCp)    im2col-packed weights
                           o_ref  (1, T, OW, OCp)   output tile
    """
    if has_halo:
        xm_ref, xh_ref, w_ref, o_ref = refs
    else:
        xm_ref, w_ref, o_ref = refs

    _, t_oh, ow, oc_pad = o_ref.shape
    c = xm_ref.shape[-1]

    x_main = xm_ref[0]                                          # (T, W, C)
    if has_halo:
        x_rows = jnp.concatenate([x_main, xh_ref[0]], axis=0)   # (T+KH-1, W, C)
    else:
        x_rows = x_main

    # im2col: fuse every (kh, kw) tap into a single matmul with K = KH*KW*C,
    # instead of KH*KW tiny-K matmuls (keeps the MXU systolic depth busy).
    cols = []
    for kh in range(kh_size):
        for kw in range(kw_size):
            cols.append(x_rows[kh:kh + t_oh, kw:kw + ow, :])    # (T, OW, C)
    patches = cols[0] if len(cols) == 1 else jnp.concatenate(cols, axis=-1)
    lhs = patches.reshape(t_oh * ow, kh_size * kw_size * c)

    out = jnp.dot(lhs, w_ref[...], preferred_element_type=jnp.float32)
    o_ref[...] = out.reshape(1, t_oh, ow, oc_pad).astype(o_ref.dtype)


def _pick_tile_oh(oh, w, ow, c, kh, kw, oc_pad, in_bytes, budget_bytes):
    """Largest output-row tile whose per-step working set fits the VMEM budget."""
    halo = kh - 1
    per_row = (3 * w * c * in_bytes              # 2x pipelined input block + concat copy
               + ow * kh * kw * c * in_bytes     # im2col patches
               + 3 * ow * oc_pad * 4)            # f32 matmul result + 2x pipelined output
    t = max(int(budget_bytes // max(per_row, 1)), 1)
    if halo > 0:
        if t >= oh:
            t = _round_up(oh, halo)              # single row-tile per image
        else:
            t = max((t // halo) * halo, halo)    # tile must be a multiple of the halo
    else:
        t = min(t, oh)
    return t


def conv2d_valid_nhwc(x_nhwc, w_kkco, *, compute_dtype=jnp.bfloat16,
                      vmem_budget_bytes=20 * 1024 * 1024):
    """VALID, stride=1, dilation=1 conv.  x: (N,H,W,C), w: (KH,KW,C,OC) -> (N,OH,OW,OC) f32."""
    n, h, w, c = x_nhwc.shape
    kh, kw, c_w, oc = w_kkco.shape
    assert c_w == c, "channel mismatch"
    oh, ow = h - kh + 1, w - kw + 1
    assert oh >= 1 and ow >= 1, "kernel larger than input"

    oc_pad = _round_up(oc, 128)                  # lane-dense output stores
    in_bytes = jnp.dtype(compute_dtype).itemsize

    tile_oh = _pick_tile_oh(oh, w, ow, c, kh, kw, oc_pad, in_bytes,
                            vmem_budget_bytes)
    oh_pad = _round_up(oh, tile_oh)
    num_row_tiles = oh_pad // tile_oh
    halo = kh - 1
    has_halo = halo > 0

    x_in = x_nhwc.astype(compute_dtype)
    if oh_pad != oh:                             # pad rows so tiles divide OH
        x_in = jnp.pad(x_in, ((0, 0), (0, oh_pad - oh), (0, 0), (0, 0)))

    # im2col-packed weights: (KH*KW*C, OC_pad), row index = (kh*KW + kw)*C + cin.
    w2d = w_kkco.reshape(kh * kw * c, oc).astype(compute_dtype)
    if oc_pad != oc:
        w2d = jnp.pad(w2d, ((0, 0), (0, oc_pad - oc)))

    in_specs = [pl.BlockSpec((1, tile_oh, w, c), lambda b, i: (b, i, 0, 0))]
    operands = [x_in]
    if has_halo:
        hstep = tile_oh // halo                  # halo block index step per row tile
        in_specs.append(pl.BlockSpec(
            (1, halo, w, c), lambda b, i, _s=hstep: (b, (i + 1) * _s, 0, 0)))
        operands.append(x_in)
    # Constant index_map -> weights are DMA'd once and stay resident.
    in_specs.append(pl.BlockSpec((kh * kw * c, oc_pad), lambda b, i: (0, 0)))
    operands.append(w2d)

    kernel = functools.partial(_conv2d_im2col_kernel, kh_size=kh, kw_size=kw,
                               has_halo=has_halo)

    flops = 2 * n * oh * ow * kh * kw * c * oc
    bytes_accessed = (x_in.size * in_bytes + w2d.size * in_bytes
                      + n * oh_pad * ow * oc_pad * 4)

    out = pl.pallas_call(
        kernel,
        out_shape=jax.ShapeDtypeStruct((n, oh_pad, ow, oc_pad), jnp.float32),
        grid=(n, num_row_tiles),
        in_specs=in_specs,
        out_specs=pl.BlockSpec((1, tile_oh, ow, oc_pad),
                               lambda b, i: (b, i, 0, 0)),
        compiler_params=pltpu.CompilerParams(
            dimension_semantics=("parallel", "parallel"),
            vmem_limit_bytes=48 * 1024 * 1024),
        cost_estimate=pl.CostEstimate(flops=flops, transcendentals=0,
                                      bytes_accessed=bytes_accessed),
    )(*operands)

    return out[:, :oh, :, :oc]


def generic_conv_layer_2d(x_nchw, weight_oihw):
    """Forward pass of GenericConvLayer2d in its default config
    (plain Conv2d, stride=1, padding=0, dilation=1, bias=False,
    no ReLU / norm / dropout).

    x_nchw:      (N, C, H, W)    float32
    weight_oihw: (OC, C, KH, KW) float32 (PyTorch Conv2d layout)
    returns:     (N, OC, OH, OW) float32
    """
    # TODO(synk): optional bias / ReLU / BatchNorm-GroupNorm / Dropout epilogues
    # and non-default stride/padding/dilation of GenericConvLayer2d are not
    # implemented (all disabled in the default config this kernel targets).
    n, c, h, w = x_nchw.shape
    oc, c_in, kh, kw = weight_oihw.shape
    assert c_in == c
    # NCHW <-> NHWC glue kept for PyTorch-compatible I/O; callers that already
    # hold NHWC activations should use conv2d_valid_nhwc directly (no transposes).
    x_nhwc = jnp.transpose(x_nchw, (0, 2, 3, 1))
    w_kkco = jnp.transpose(weight_oihw, (2, 3, 1, 0))          # (KH, KW, C, OC)
    out_nhwc = conv2d_valid_nhwc(x_nhwc, w_kkco)
    return jnp.transpose(out_nhwc, (0, 3, 1, 2))


if __name__ == "__main__":
    key = jax.random.PRNGKey(0)
    k_x, k_w = jax.random.split(key)

    N, C, H, W = 2, 4, 16, 16
    OC, KH, KW = 8, 3, 3

    x = jax.random.normal(k_x, (N, C, H, W), dtype=jnp.float32)
    weight = jax.random.normal(k_w, (OC, C, KH, KW), dtype=jnp.float32) * 0.1

    conv = jax.jit(generic_conv_layer_2d)
    out = jax.block_until_ready(conv(x, weight))

    # Reference with the same bf16 operands / f32 accumulation as the kernel.
    ref = jax.lax.conv_general_dilated(
        x.astype(jnp.bfloat16), weight.astype(jnp.bfloat16),
        window_strides=(1, 1), padding="VALID",
        dimension_numbers=("NCHW", "OIHW", "NCHW"),
        preferred_element_type=jnp.float32)
    assert out.shape == (N, OC, H - KH + 1, W - KW + 1)
    assert jnp.allclose(out, ref, atol=2e-2, rtol=2e-2)

    print("KERNEL_OK")
</pallas_src>

<mosaic_0001>
module attributes {stable_mosaic.version = 11 : i64} {
  func.func @_conv2d_im2col_kernel(%arg0: i32, %arg1: i32, %arg2: memref<1x14x16x4xbf16, #tpu.memory_space<vmem>>, %arg3: memref<1x2x16x4xbf16, #tpu.memory_space<vmem>>, %arg4: memref<36x128xbf16, #tpu.memory_space<vmem>>, %arg5: memref<1x14x14x128xf32, #tpu.memory_space<vmem>>) attributes {dimension_semantics = [#tpu.dimension_semantics<parallel>, #tpu.dimension_semantics<parallel>], iteration_bounds = array<i64: 2, 1>, scalar_prefetch = 0 : i64, scratch_operands = 0 : i64, tpu.core_type = #tpu.core_type<tc>, window_params = [{transform_indices = @transform_0, window_bounds = array<i64: 1, 14, 16, 4>}, {transform_indices = @transform_1, window_bounds = array<i64: 1, 2, 16, 4>}, {pipeline_mode = #tpu.pipeline_mode<synchronous>, transform_indices = @transform_2, window_bounds = array<i64: 36, 128>}, {transform_indices = @transform_3, window_bounds = array<i64: 1, 14, 14, 128>}]} {
    %c0 = arith.constant 0 : index
    %c0_0 = arith.constant 0 : index
    %c0_1 = arith.constant 0 : index
    %c0_2 = arith.constant 0 : index
    %0 = vector.load %arg2[%c0, %c0_0, %c0_1, %c0_2] : memref<1x14x16x4xbf16, #tpu.memory_space<vmem>>, vector<1x14x16x4xbf16>
    %1 = vector.shape_cast %0 : vector<1x14x16x4xbf16> to vector<14x16x4xbf16>
    %c0_3 = arith.constant 0 : index
    %c0_4 = arith.constant 0 : index
    %c0_5 = arith.constant 0 : index
    %c0_6 = arith.constant 0 : index
    %2 = vector.load %arg3[%c0_3, %c0_4, %c0_5, %c0_6] : memref<1x2x16x4xbf16, #tpu.memory_space<vmem>>, vector<1x2x16x4xbf16>
    %3 = vector.shape_cast %2 : vector<1x2x16x4xbf16> to vector<2x16x4xbf16>
    %4 = tpu.concatenate %1, %3 in 0 : vector<14x16x4xbf16>, vector<2x16x4xbf16> -> vector<16x16x4xbf16>
    %5 = vector.extract_strided_slice %4 {offsets = [0, 0, 0], sizes = [14, 14, 4], strides = [1, 1, 1]} : vector<16x16x4xbf16> to vector<14x14x4xbf16>
    %6 = vector.extract_strided_slice %4 {offsets = [0, 1, 0], sizes = [14, 14, 4], strides = [1, 1, 1]} : vector<16x16x4xbf16> to vector<14x14x4xbf16>
    %7 = vector.extract_strided_slice %4 {offsets = [0, 2, 0], sizes = [14, 14, 4], strides = [1, 1, 1]} : vector<16x16x4xbf16> to vector<14x14x4xbf16>
    %8 = vector.extract_strided_slice %4 {offsets = [1, 0, 0], sizes = [14, 14, 4], strides = [1, 1, 1]} : vector<16x16x4xbf16> to vector<14x14x4xbf16>
    %9 = vector.extract_strided_slice %4 {offsets = [1, 1, 0], sizes = [14, 14, 4], strides = [1, 1, 1]} : vector<16x16x4xbf16> to vector<14x14x4xbf16>
    %10 = vector.extract_strided_slice %4 {offsets = [1, 2, 0], sizes = [14, 14, 4], strides = [1, 1, 1]} : vector<16x16x4xbf16> to vector<14x14x4xbf16>
    %11 = vector.extract_strided_slice %4 {offsets = [2, 0, 0], sizes = [14, 14, 4], strides = [1, 1, 1]} : vector<16x16x4xbf16> to vector<14x14x4xbf16>
    %12 = vector.extract_strided_slice %4 {offsets = [2, 1, 0], sizes = [14, 14, 4], strides = [1, 1, 1]} : vector<16x16x4xbf16> to vector<14x14x4xbf16>
    %13 = vector.extract_strided_slice %4 {offsets = [2, 2, 0], sizes = [14, 14, 4], strides = [1, 1, 1]} : vector<16x16x4xbf16> to vector<14x14x4xbf16>
    %14 = tpu.concatenate %5, %6, %7, %8, %9, %10, %11, %12, %13 in 2 : vector<14x14x4xbf16>, vector<14x14x4xbf16>, vector<14x14x4xbf16>, vector<14x14x4xbf16>, vector<14x14x4xbf16>, vector<14x14x4xbf16>, vector<14x14x4xbf16>, vector<14x14x4xbf16>, vector<14x14x4xbf16> -> vector<14x14x36xbf16>
    %15 = vector.shape_cast %14 : vector<14x14x36xbf16> to vector<196x36xbf16>
    %c0_7 = arith.constant 0 : index
    %c0_8 = arith.constant 0 : index
    %16 = vector.load %arg4[%c0_7, %c0_8] : memref<36x128xbf16, #tpu.memory_space<vmem>>, vector<36x128xbf16>
    %cst = arith.constant dense<0.000000e+00> : vector<196x128xf32>
    %17 = tpu.matmul %15, %16, %cst {dimension_numbers = #tpu.dot_dimension_numbers<[1], [0], [0], [1], [0, 0, 1, 1], [], []>} : vector<196x36xbf16>, vector<36x128xbf16>, vector<196x128xf32> -> vector<196x128xf32>
    %18 = vector.shape_cast %17 : vector<196x128xf32> to vector<1x14x14x128xf32>
    %c0_9 = arith.constant 0 : index
    %c0_10 = arith.constant 0 : index
    %c0_11 = arith.constant 0 : index
    %c0_12 = arith.constant 0 : index
    %19 = vector.load %arg5[%c0_9, %c0_10, %c0_11, %c0_12] : memref<1x14x14x128xf32, #tpu.memory_space<vmem>>, vector<1x14x14x128xf32>
    tpu.vector_store %arg5[%c0_9, %c0_10, %c0_11, %c0_12], %18 {strides = array<i32>} : memref<1x14x14x128xf32, #tpu.memory_space<vmem>>, vector<1x14x14x128xf32>,
    return
  }
  func.func @transform_0(%arg0: i32, %arg1: i32) -> (i32, i32, i32, i32) {
    %c0_i32 = arith.constant 0 : i32
    %c0_i32_0 = arith.constant 0 : i32
    %c0_i32_1 = arith.constant 0 : i32
    return %arg0, %arg1, %c0_i32, %c0_i32_0 : i32, i32, i32, i32
  }
  func.func @transform_1(%arg0: i32, %arg1: i32) -> (i32, i32, i32, i32) {
    %c1_i32 = arith.constant 1 : i32
    %0 = arith.addi %arg1, %c1_i32 : i32
    %c7_i32 = arith.constant 7 : i32
    %1 = arith.muli %0, %c7_i32 : i32
    %c0_i32 = arith.constant 0 : i32
    %c0_i32_0 = arith.constant 0 : i32
    %c0_i32_1 = arith.constant 0 : i32
    return %arg0, %1, %c0_i32, %c0_i32_0 : i32, i32, i32, i32
  }
  func.func @transform_2(%arg0: i32, %arg1: i32) -> (i32, i32) {
    %c0_i32 = arith.constant 0 : i32
    %c0_i32_0 = arith.constant 0 : i32
    %c0_i32_1 = arith.constant 0 : i32
    return %c0_i32, %c0_i32_0 : i32, i32
  }
  func.func @transform_3(%arg0: i32, %arg1: i32) -> (i32, i32, i32, i32) {
    %c0_i32 = arith.constant 0 : i32
    %c0_i32_0 = arith.constant 0 : i32
    %c0_i32_1 = arith.constant 0 : i32
    return %arg0, %arg1, %c0_i32, %c0_i32_0 : i32, i32, i32, i32
  }
}

</mosaic_0001>

<llo_original>
// kernel: generic_conv_layer_2d.1
$region0: #{generic_conv_layer_2d.1}
  #allocation0 [shape = 'u32[]', space=smem, size = 0x4, offset = 0x4, fixed_abs, tag = 'smem constant byte address 0x4 - core index']
  #allocation1 [shape = 'u32[144,128]{1,0:T(1,128)}', space=vmem, size = 0x12000, scoped, tag = 'internal scratch']
  %s0 = inlined_call_operand.vmem [shape: bf16[2,16,16,4], index: 0, kind: input, shape index: {}, may-alias: {0,1}]
  %s1 = inlined_call_operand.vmem [shape: bf16[2,16,16,4], index: 1, kind: input, shape index: {}, may-alias: {0,1}]
  %s2 = inlined_call_operand.vmem [shape: bf16[36,128], index: 2, kind: input, shape index: {}]
  %s3 = inlined_call_operand.vmem [shape: f32[2,14,14,128], index: 3, kind: output, shape index: {}]
  %s4 = sld [smem:[#allocation0]]
  $region45: #{generic_conv_layer_2d.1} parent=0
    _
  %s6 = ssub.s32 1, %s4
  %s7 = scalar_select 0, %s6, %s4
  loop: start=0, step=1, limit=4
  $region2: #{generic_conv_layer_2d.1} parent=0 // loop_pre_header
    _
  $region3: #{generic_conv_layer_2d.1} parent=0 // loop_header
    %s9 = sphi 0, %s13
    %p10 = scmp.ge.s32.totalorder %s9, 4
    %s16 = sphi 0, %s28
    %s17 = sphi 0, %s24
    %s18 = sphi 0, %s16
    %s19 = sphi 0, %s17
    %s20 = sphi 0, %s18
    %s21 = sphi 0, %s19
    %s33 = sphi 0, %s35
    %s36 = sphi 0, %s33
    %s37 = sphi 0, %s36
    %s53 = sphi 0, %s37
    %s65 = sphi 0, %s67
    %s68 = sphi 0, %s65
    %s69 = sphi 0, %s68
    %s85 = sphi 0, %s69
    %s89 = sphi 0, %s89
    %s91 = sphi 0, %s89
    %s92 = sphi 0, %s91
    %s106 = sphi 0, %s92
    %s114 = sphi 0, %s116
    %s117 = sphi 0, %s114
    %s118 = sphi 0, %s117
    %s134 = sphi 0, %s118
  $region4: #{generic_conv_layer_2d.1} parent=0 // loop_header_branch
    %12 = sbr.rel (%p10) target = $region8
  $region5: #{generic_conv_layer_2d.1} parent=0 // loop_body
    %s14 = ssub.s32 %s9, 1
    %s15 = ssub.s32 %s9, 2
    %s22 = sadd.s32 1, %s17
    %p23 = scmp.ge.s32.totalorder %s22, 1
    %s24 = scalar_select %p23, 0, %s22
    %s25 = sadd.s32 1, %s16
    %s26 = scalar_select %p23, %s25, %s16
    %p27 = scmp.ge.s32.totalorder %s26, 2
    %s28 = scalar_select %p27, 0, %s26
    %s29 = ssub.s32 %s16, %s28
    %s30 = ssub.s32 %s17, %s24
    %s31 = sor.u32 %s29, %s30
    %p32 = scmp.eq.s32.totalorder %s31, 0
    %s34 = sadd.s32 %s33, 1
    %s35 = scalar_select %p32, %s33, %s34
    %p38 = pneg %p32
    %p39 = scmp.eq.s32.totalorder %s9, 1
    %p40 = por %p38, %p39
    %p41 = scmp.ne.s32.totalorder %s33, %s36
    %p42 = scmp.eq.s32.totalorder %s9, 0
    %p43 = por %p41, %p42
    %p44 = scmp.ne.s32.totalorder %s33, %s36
    %p45 = scmp.eq.s32.totalorder %s14, 1
    %p46 = por %p44, %p45
    %p47 = scmp.ne.s32.totalorder %s36, %s37
    %p48 = scmp.eq.s32.totalorder %s14, 0
    %p49 = por %p47, %p48
    %p50 = scmp.ne.s32.totalorder %s36, %s37
    %p51 = scmp.eq.s32.totalorder %s15, 1
    %p52 = por %p50, %p51
    %p54 = scmp.ne.s32.totalorder %s37, %s53
    %p55 = scmp.eq.s32.totalorder %s15, 0
    %p56 = por %p54, %p55
    %s57 = sadd.s32 %s17, 1
    %s58 = smul.u32 %s57, 7
    %s59 = sadd.s32 %s24, 1
    %s60 = smul.u32 %s59, 7
    %s61 = ssub.s32 %s16, %s28
    %s62 = ssub.s32 %s58, %s60
    %s63 = sor.u32 %s61, %s62
    %p64 = scmp.eq.s32.totalorder %s63, 0
    %s66 = sadd.s32 %s65, 1
    %s67 = scalar_select %p64, %s65, %s66
    %p70 = pneg %p64
    %p71 = scmp.eq.s32.totalorder %s9, 1
    %p72 = por %p70, %p71
    %p73 = scmp.ne.s32.totalorder %s65, %s68
    %p74 = scmp.eq.s32.totalorder %s9, 0
    %p75 = por %p73, %p74
    %p76 = scmp.ne.s32.totalorder %s65, %s68
    %p77 = scmp.eq.s32.totalorder %s14, 1
    %p78 = por %p76, %p77
    %p79 = scmp.ne.s32.totalorder %s68, %s69
    %p80 = scmp.eq.s32.totalorder %s14, 0
    %p81 = por %p79, %p80
    %p82 = scmp.ne.s32.totalorder %s68, %s69
    %p83 = scmp.eq.s32.totalorder %s15, 1
    %p84 = por %p82, %p83
    %p86 = scmp.ne.s32.totalorder %s69, %s85
    %p87 = scmp.eq.s32.totalorder %s15, 0
    %p88 = por %p86, %p87
    %s90 = sadd.s32 %s89, 1
    %p93 = scmp.eq.s32.totalorder %s9, 1
    %p94 = scmp.ne.s32.totalorder %s89, %s91
    %p95 = scmp.eq.s32.totalorder %s9, 0
    %p96 = por %p94, %p95
    %p97 = scmp.ne.s32.totalorder %s89, %s91
    %p98 = scmp.eq.s32.totalorder %s14, 1
    %p99 = por %p97, %p98
    %p100 = scmp.ne.s32.totalorder %s91, %s92
    %p101 = scmp.eq.s32.totalorder %s14, 0
    %p102 = por %p100, %p101
    %p103 = scmp.ne.s32.totalorder %s91, %s92
    %p104 = scmp.eq.s32.totalorder %s15, 1
    %p105 = por %p103, %p104
    %p107 = scmp.ne.s32.totalorder %s92, %s106
    %p108 = scmp.eq.s32.totalorder %s15, 0
    %p109 = por %p107, %p108
    %s110 = ssub.s32 %s16, %s28
    %s111 = ssub.s32 %s17, %s24
    %s112 = sor.u32 %s110, %s111
    %p113 = scmp.eq.s32.totalorder %s112, 0
    %s115 = sadd.s32 %s114, 1
    %s116 = scalar_select %p113, %s114, %s115
    %p119 = pneg %p113
    %p120 = scmp.eq.s32.totalorder %s9, 1
    %p121 = por %p119, %p120
    %p122 = scmp.ne.s32.totalorder %s114, %s117
    %p123 = scmp.eq.s32.totalorder %s9, 0
    %p124 = por %p122, %p123
    %p125 = scmp.ne.s32.totalorder %s114, %s117
    %p126 = scmp.eq.s32.totalorder %s14, 1
    %p127 = por %p125, %p126
    %p128 = scmp.ne.s32.totalorder %s117, %s118
    %p129 = scmp.eq.s32.totalorder %s14, 0
    %p130 = por %p128, %p129
    %p131 = scmp.ne.s32.totalorder %s117, %s118
    %p132 = scmp.eq.s32.totalorder %s15, 1
    %p133 = por %p131, %p132
    %p135 = scmp.ne.s32.totalorder %s118, %s134
    %p136 = scmp.eq.s32.totalorder %s15, 0
    %p137 = por %p135, %p136
    %p138 = scmp.le.s32.totalorder 1, %s9
    %p139 = scmp.lt.s32.totalorder %s9, 3
    %p140 = pnand %p138, %p139
    %p141 = pneg %p140
    // Predicated region
    $region9: #{generic_conv_layer_2d.1} parent=5 // pred_check
      _
    $region10: #{generic_conv_layer_2d.1} parent=5 // pred_check_branch
      %143 = sbr.rel (%p140) target = $region12
    $region11: #{generic_conv_layer_2d.1} parent=5 // pred_region
      %s144 = ssub.s32 %s9, 1
      // Predicated region
      $region13: #{generic_conv_layer_2d.1} parent=11 // pred_check
        %p145 = pneg %p102
      $region14: #{generic_conv_layer_2d.1} parent=11 // pred_check_branch
        %147 = sbr.rel (%p145) target = $region16
      $region15: #{generic_conv_layer_2d.1} parent=11 // pred_region
        _
      $region16: #{generic_conv_layer_2d.1} parent=11 // pred_fallthru
        _
    $region12: #{generic_conv_layer_2d.1} parent=5 // pred_fallthru
      _
    %p148 = scmp.lt.s32.totalorder %s9, 2
    // Predicated region
    $region17: #{generic_conv_layer_2d.1} parent=5 // pred_check
      %p149 = pneg %p148
    $region18: #{generic_conv_layer_2d.1} parent=5 // pred_check_branch
      %151 = sbr.rel (%p149) target = $region20
    $region19: #{generic_conv_layer_2d.1} parent=5 // pred_region
      // Predicated region
      $region21: #{generic_conv_layer_2d.1} parent=19 // pred_check
        %p152 = pneg %p43
      $region22: #{generic_conv_layer_2d.1} parent=19 // pred_check_branch
        %154 = sbr.rel (%p152) target = $region24
      $region23: #{generic_conv_layer_2d.1} parent=19 // pred_region
        %s155 = smul.u32 14, %s17
        %s156 = ssub.s32 16, %s155
        %p157 = scmp.lt.s32.totalorder %s156, 14
        %s158 = scalar_select %p157, %s156, 14
        %s159 = smul.u32 64, %s158
        %s160 = smul.u32 %s159, 2
        %p161 = scmp.lt.s32.totalorder %s16, 1
        %s162 = scalar_select %p161, %s16, 1
        %p163 = scmp.lt.s32.totalorder %s155, 15
        %s164 = scalar_select %p163, %s155, 15
        %s165 = smul.addr %s164, 2
        %s166 = smul.addr %s162, 32
        %s167 = sadd.s32 %s165, %s166
        %s168 = smul.addr %s167, 4
        %s169 = scalar_lea.vmem %s0, %s168
        %s170 = smul.u32 14, %s17
        %s171 = ssub.s32 16, %s170
        %p172 = scmp.lt.s32.totalorder %s171, 14
        %s173 = scalar_select %p172, %s171, 14
        %s174 = smul.u32 64, %s173
        %s175 = smul.u32 %s174, 2
      $region24: #{generic_conv_layer_2d.1} parent=19 // pred_fallthru
        _
      // Predicated region
      $region25: #{generic_conv_layer_2d.1} parent=19 // pred_check
        %p176 = pneg %p75
      $region26: #{generic_conv_layer_2d.1} parent=19 // pred_check_branch
        %178 = sbr.rel (%p176) target = $region28
      $region27: #{generic_conv_layer_2d.1} parent=19 // pred_region
        %s179 = sadd.s32 %s17, 1
        %s180 = smul.u32 %s179, 7
        %s181 = smul.u32 2, %s180
        %p182 = scmp.lt.s32.totalorder %s16, 1
        %s183 = scalar_select %p182, %s16, 1
        %p184 = scmp.lt.s32.totalorder %s181, 15
        %s185 = scalar_select %p184, %s181, 15
        %s186 = smul.addr %s185, 2
        %s187 = smul.addr %s183, 32
        %s188 = sadd.s32 %s186, %s187
        %s189 = smul.addr %s188, 4
        %s190 = scalar_lea.vmem %s1, %s189
        %s191 = sadd.s32 %s17, 1
        %s192 = smul.u32 %s191, 7
        %s193 = smul.u32 2, %s192
      $region28: #{generic_conv_layer_2d.1} parent=19 // pred_fallthru
        _
    $region20: #{generic_conv_layer_2d.1} parent=5 // pred_fallthru
      _
    %p194 = scmp.le.s32.totalorder 1, %s9
    %p195 = scmp.lt.s32.totalorder %s9, 3
    %p196 = pnand %p194, %p195
    %p197 = pneg %p196
    // Predicated region
    $region29: #{generic_conv_layer_2d.1} parent=5 // pred_check
      _
    $region30: #{generic_conv_layer_2d.1} parent=5 // pred_check_branch
      %199 = sbr.rel (%p196) target = $region32
    $region31: #{generic_conv_layer_2d.1} parent=5 // pred_region
      %s200 = ssub.s32 %s9, 1
      %s201 = smul.u32 14, %s19
      %s202 = ssub.s32 16, %s201
      %p203 = scmp.lt.s32.totalorder %s202, 14
      %s204 = scalar_select %p203, %s202, 14
      %s205 = smul.u32 64, %s204
      %s206 = smul.u32 %s205, 2
      %p207 = scmp.lt.s32.totalorder %s18, 1
      %s208 = scalar_select %p207, %s18, 1
      %p209 = scmp.lt.s32.totalorder %s201, 15
      %s210 = scalar_select %p209, %s201, 15
      %s211 = smul.addr %s210, 2
      %s212 = smul.addr %s208, 32
      %s213 = sadd.s32 %s211, %s212
      %s214 = smul.addr %s213, 4
      %s215 = scalar_lea.vmem %s0, %s214
      %p216 = pneg %p49
      %p217 = pneg %p46
      %s218 = sadd.s32 %s19, 1
      %s219 = smul.u32 %s218, 7
      %s220 = smul.u32 2, %s219
      %p221 = scmp.lt.s32.totalorder %s18, 1
      %s222 = scalar_select %p221, %s18, 1
      %p223 = scmp.lt.s32.totalorder %s220, 15
      %s224 = scalar_select %p223, %s220, 15
      %s225 = smul.addr %s224, 2
      %s226 = smul.addr %s222, 32
      %s227 = sadd.s32 %s225, %s226
      %s228 = smul.addr %s227, 4
      %s229 = scalar_lea.vmem %s1, %s228
      %p230 = pneg %p81
      %p231 = pneg %p78
      %p232 = pneg %p102
      %p233 = pneg %p99
      %p234 = pneg %p130
      %p235 = pneg %p127
      %s236 = smul.u32 14, %s19
      %p237 = scmp.lt.s32.totalorder %s18, 1
      %s238 = scalar_select %p237, %s18, 1
      %p239 = scmp.lt.s32.totalorder %s236, 13
      %s240 = scalar_select %p239, %s236, 13
      %s241 = smul.addr %s240, 2
      %s242 = smul.addr %s238, 28
      %s243 = sadd.s32 %s241, %s242
      %s244 = smul.addr %s243, 8
      %s245 = scalar_lea.vmem %s3, %s244
      %s246 = smul.u32 14, %s19
      %s247 = ssub.s32 16, %s246
      %p248 = scmp.lt.s32.totalorder %s247, 14
      %s249 = scalar_select %p248, %s247, 14
      %s250 = smul.u32 64, %s249
      %s251 = smul.u32 %s250, 2
      %p252 = scmp.lt.s32.totalorder %s18, 1
      %s253 = scalar_select %p252, %s18, 1
      %p254 = scmp.lt.s32.totalorder %s246, 15
      %s255 = scalar_select %p254, %s246, 15
      %s256 = smul.addr %s255, 2
      %s257 = smul.addr %s253, 32
      %s258 = sadd.s32 %s256, %s257
      %s259 = smul.addr %s258, 4
      %s260 = scalar_lea.vmem %s0, %s259
      %s261 = smul.u32 14, %s19
      %s262 = ssub.s32 16, %s261
      %p263 = scmp.lt.s32.totalorder %s262, 14
      %s264 = scalar_select %p263, %s262, 14
      %s265 = smul.u32 64, %s264
      %s266 = smul.u32 %s265, 2
      %s267 = sadd.s32 %s19, 1
      %s268 = smul.u32 %s267, 7
      %s269 = smul.u32 2, %s268
      %p270 = scmp.lt.s32.totalorder %s18, 1
      %s271 = scalar_select %p270, %s18, 1
      %p272 = scmp.lt.s32.totalorder %s269, 15
      %s273 = scalar_select %p272, %s269, 15
      %s274 = smul.addr %s273, 2
      %s275 = smul.addr %s271, 32
      %s276 = sadd.s32 %s274, %s275
      %s277 = smul.addr %s276, 4
      %s278 = scalar_lea.vmem %s1, %s277
      %s279 = sadd.s32 %s19, 1
      %s280 = smul.u32 %s279, 7
      %s281 = smul.u32 2, %s280
      %s282 = smul.u32 14, %s19
      %p283 = scmp.lt.s32.totalorder %s18, 1
      %s284 = scalar_select %p283, %s18, 1
      %p285 = scmp.lt.s32.totalorder %s282, 13
      %s286 = scalar_select %p285, %s282, 13
      %s287 = smul.addr %s286, 2
      %s288 = smul.addr %s284, 28
      %s289 = sadd.s32 %s287, %s288
      %s290 = smul.addr %s289, 8
      %s291 = scalar_lea.vmem %s3, %s290
      %s292 = smul.u32 14, %s19
      %v294 = vld [vmem:[%s260] sm:$0xf]
      %v295 = vld [vmem:[%s260 + $0x4] sm:$0xf]
      %v296 = vld [vmem:[%s260 + $0x8] sm:$0xf]
      %v297 = vld [vmem:[%s260 + $0xc] sm:$0xf]
      %v298 = vld [vmem:[%s260 + $0x10] sm:$0xf]
      %v299 = vld [vmem:[%s260 + $0x14] sm:$0xf]
      %v300 = vld [vmem:[%s260 + $0x18] sm:$0xf]
      %v301 = vld [vmem:[%s260 + $0x1c] sm:$0xf]
      %v302 = vld [vmem:[%s260 + $0x20] sm:$0xf]
      %v303 = vld [vmem:[%s260 + $0x24] sm:$0xf]
      %v304 = vld [vmem:[%s260 + $0x28] sm:$0xf]
      %v305 = vld [vmem:[%s260 + $0x2c] sm:$0xf]
      %v306 = vld [vmem:[%s260 + $0x30] sm:$0xf]
      %v307 = vld [vmem:[%s260 + $0x34] sm:$0xf]
      %v308 = vld [vmem:[%s260 + $0x38] sm:$0xf]
      %v309 = vld [vmem:[%s260 + $0x3c] sm:$0xf]
      %v310 = vld [vmem:[%s260 + $0x40] sm:$0xf]
      %v311 = vld [vmem:[%s260 + $0x44] sm:$0xf]
      %v312 = vld [vmem:[%s260 + $0x48] sm:$0xf]
      %v313 = vld [vmem:[%s260 + $0x4c] sm:$0xf]
      %v314 = vld [vmem:[%s260 + $0x50] sm:$0xf]
      %v315 = vld [vmem:[%s260 + $0x54] sm:$0xf]
      %v316 = vld [vmem:[%s260 + $0x58] sm:$0xf]
      %v317 = vld [vmem:[%s260 + $0x5c] sm:$0xf]
      %v318 = vld [vmem:[%s260 + $0x60] sm:$0xf]
      %v319 = vld [vmem:[%s260 + $0x64] sm:$0xf]
      %v320 = vld [vmem:[%s260 + $0x68] sm:$0xf]
      %v321 = vld [vmem:[%s260 + $0x6c] sm:$0xf]
      %v322 = vld [vmem:[%s278] sm:$0xf]
      %v323 = vld [vmem:[%s278 + $0x4] sm:$0xf]
      %v324 = vld [vmem:[%s278 + $0x8] sm:$0xf]
      %v325 = vld [vmem:[%s278 + $0xc] sm:$0xf]
      %v354 = vunpack.c.l.b16 %v294
      %v355 = vunpack.c.l.b16 %v295
      %v356 = vunpack.c.l.b16 %v296
      %v357 = vunpack.c.l.b16 %v297
      %v358 = vunpack.c.l.b16 %v298
      %v359 = vunpack.c.l.b16 %v299
      %v360 = vunpack.c.l.b16 %v300
      %v361 = vunpack.c.l.b16 %v301
      %v362 = vunpack.c.l.b16 %v302
      %v363 = vunpack.c.l.b16 %v303
      %v364 = vunpack.c.l.b16 %v304
      %v365 = vunpack.c.l.b16 %v305
      %v366 = vunpack.c.l.b16 %v306
      %v367 = vunpack.c.l.b16 %v307
      %v368 = vunpack.c.l.b16 %v308
      %v369 = vunpack.c.l.b16 %v309
      %v370 = vunpack.c.l.b16 %v310
      %v371 = vunpack.c.l.b16 %v311
      %v372 = vunpack.c.l.b16 %v312
      %v373 = vunpack.c.l.b16 %v313
      %v374 = vunpack.c.l.b16 %v314
      %v375 = vunpack.c.l.b16 %v315
      %v376 = vunpack.c.l.b16 %v316
      %v377 = vunpack.c.l.b16 %v317
      %v378 = vunpack.c.l.b16 %v318
      %v379 = vunpack.c.l.b16 %v319
      %v380 = vunpack.c.l.b16 %v320
      %v381 = vunpack.c.l.b16 %v321
      %v382 = vpack.c.b16 %v355, %v354
      %v383 = vpack.c.b16 %v357, %v356
      %v384 = vpack.c.b16 %v359, %v358
      %v385 = vpack.c.b16 %v361, %v360
      %v386 = vpack.c.b16 %v363, %v362
      %v387 = vpack.c.b16 %v365, %v364
      %v388 = vpack.c.b16 %v367, %v366
      %v389 = vpack.c.b16 %v369, %v368
      %v390 = vpack.c.b16 %v371, %v370
      %v391 = vpack.c.b16 %v373, %v372
      %v392 = vpack.c.b16 %v375, %v374
      %v393 = vpack.c.b16 %v377, %v376
      %v394 = vpack.c.b16 %v379, %v378
      %v395 = vpack.c.b16 %v381, %v380
      %v397 = vshrl.u32 %v382, 16
      %v399 = vshll.u32 %v382, 16
      %v401 = vrot.slane %v399, 1
      %v402 = vor.u32 %v397, %v401
      %v404 = vshrl.u32 %v383, 16
      %v406 = vshll.u32 %v383, 16
      %v408 = vrot.slane %v406, 1
      %v409 = vor.u32 %v404, %v408
      %v411 = vshrl.u32 %v384, 16
      %v413 = vshll.u32 %v384, 16
      %v415 = vrot.slane %v413, 1
      %v416 = vor.u32 %v411, %v415
      %v418 = vshrl.u32 %v385, 16
      %v420 = vshll.u32 %v385, 16
      %v422 = vrot.slane %v420, 1
      %v423 = vor.u32 %v418, %v422
      %v425 = vshrl.u32 %v386, 16
      %v427 = vshll.u32 %v386, 16
      %v429 = vrot.slane %v427, 1
      %v430 = vor.u32 %v425, %v429
      %v432 = vshrl.u32 %v387, 16
      %v434 = vshll.u32 %v387, 16
      %v436 = vrot.slane %v434, 1
      %v437 = vor.u32 %v432, %v436
      %v439 = vshrl.u32 %v388, 16
      %v441 = vshll.u32 %v388, 16
      %v443 = vrot.slane %v441, 1
      %v444 = vor.u32 %v439, %v443
      %v446 = vshrl.u32 %v389, 16
      %v448 = vshll.u32 %v389, 16
      %v450 = vrot.slane %v448, 1
      %v451 = vor.u32 %v446, %v450
      %v453 = vshrl.u32 %v390, 16
      %v455 = vshll.u32 %v390, 16
      %v457 = vrot.slane %v455, 1
      %v458 = vor.u32 %v453, %v457
      %v460 = vshrl.u32 %v391, 16
      %v462 = vshll.u32 %v391, 16
      %v464 = vrot.slane %v462, 1
      %v465 = vor.u32 %v460, %v464
      %v467 = vshrl.u32 %v392, 16
      %v469 = vshll.u32 %v392, 16
      %v471 = vrot.slane %v469, 1
      %v472 = vor.u32 %v467, %v471
      %v474 = vshrl.u32 %v393, 16
      %v476 = vshll.u32 %v393, 16
      %v478 = vrot.slane %v476, 1
      %v479 = vor.u32 %v474, %v478
      %v481 = vshrl.u32 %v394, 16
      %v483 = vshll.u32 %v394, 16
      %v485 = vrot.slane %v483, 1
      %v486 = vor.u32 %v481, %v485
      %v488 = vshrl.u32 %v395, 16
      %v490 = vshll.u32 %v395, 16
      %v492 = vrot.slane %v490, 1
      %v493 = vor.u32 %v488, %v492
      %494 = vrot.lane.b32.xlu0 %v402, 4
      %v495 = vpop.permute.xlu0 %494
      %496 = vrot.lane.b32.xlu0 %v409, 4
      %v497 = vpop.permute.xlu0 %496
      %498 = vrot.lane.b32.xlu0 %v416, 4
      %v499 = vpop.permute.xlu0 %498
      %500 = vrot.lane.b32.xlu0 %v423, 4
      %v501 = vpop.permute.xlu0 %500
      %502 = vrot.lane.b32.xlu0 %v430, 4
      %v503 = vpop.permute.xlu0 %502
      %504 = vrot.lane.b32.xlu0 %v437, 4
      %v505 = vpop.permute.xlu0 %504
      %506 = vrot.lane.b32.xlu0 %v444, 4
      %v507 = vpop.permute.xlu0 %506
      %508 = vrot.lane.b32.xlu0 %v451, 4
      %v509 = vpop.permute.xlu0 %508
      %510 = vrot.lane.b32.xlu0 %v458, 4
      %v511 = vpop.permute.xlu0 %510
      %512 = vrot.lane.b32.xlu0 %v465, 4
      %v513 = vpop.permute.xlu0 %512
      %514 = vrot.lane.b32.xlu0 %v472, 4
      %v515 = vpop.permute.xlu0 %514
      %516 = vrot.lane.b32.xlu0 %v479, 4
      %v517 = vpop.permute.xlu0 %516
      %518 = vrot.lane.b32.xlu0 %v486, 4
      %v519 = vpop.permute.xlu0 %518
      %520 = vrot.lane.b32.xlu0 %v493, 4
      %v521 = vpop.permute.xlu0 %520
      %v522 = vrot.slane %v382, 1
      %v523 = vrot.slane %v383, 1
      %v524 = vrot.slane %v384, 1
      %v525 = vrot.slane %v385, 1
      %v526 = vrot.slane %v386, 1
      %v527 = vrot.slane %v387, 1
      %v528 = vrot.slane %v388, 1
      %v529 = vrot.slane %v389, 1
      %v530 = vrot.slane %v390, 1
      %v531 = vrot.slane %v391, 1
      %v532 = vrot.slane %v392, 1
      %v533 = vrot.slane %v393, 1
      %v534 = vrot.slane %v394, 1
      %v535 = vrot.slane %v395, 1
      %536 = vrot.lane.b32.xlu0 %v522, 8
      %v537 = vpop.permute.xlu0 %536
      %538 = vrot.lane.b32.xlu0 %v523, 8
      %v539 = vpop.permute.xlu0 %538
      %540 = vrot.lane.b32.xlu0 %v524, 8
      %v541 = vpop.permute.xlu0 %540
      %542 = vrot.lane.b32.xlu0 %v525, 8
      %v543 = vpop.permute.xlu0 %542
      %544 = vrot.lane.b32.xlu0 %v526, 8
      %v545 = vpop.permute.xlu0 %544
      %546 = vrot.lane.b32.xlu0 %v527, 8
      %v547 = vpop.permute.xlu0 %546
      %548 = vrot.lane.b32.xlu0 %v528, 8
      %v549 = vpop.permute.xlu0 %548
      %550 = vrot.lane.b32.xlu0 %v529, 8
      %v551 = vpop.permute.xlu0 %550
      %552 = vrot.lane.b32.xlu0 %v530, 8
      %v553 = vpop.permute.xlu0 %552
      %554 = vrot.lane.b32.xlu0 %v531, 8
      %v555 = vpop.permute.xlu0 %554
      %556 = vrot.lane.b32.xlu0 %v532, 8
      %v557 = vpop.permute.xlu0 %556
      %558 = vrot.lane.b32.xlu0 %v533, 8
      %v559 = vpop.permute.xlu0 %558
      %560 = vrot.lane.b32.xlu0 %v534, 8
      %v561 = vpop.permute.xlu0 %560
      %562 = vrot.lane.b32.xlu0 %v535, 8
      %v563 = vpop.permute.xlu0 %562
      %v566 = vunpack.c.l.b16 %v322
      %v567 = vunpack.c.l.b16 %v323
      %v568 = vpack.c.b16 %v567, %v566
      %569 = vrot.lane.b32.xlu0 %v383, 12
      %v570 = vpop.permute.xlu0 %569
      %571 = vrot.lane.b32.xlu0 %v384, 12
      %v572 = vpop.permute.xlu0 %571
      %573 = vrot.lane.b32.xlu0 %v385, 12
      %v574 = vpop.permute.xlu0 %573
      %575 = vrot.lane.b32.xlu0 %v386, 12
      %v576 = vpop.permute.xlu0 %575
      %577 = vrot.lane.b32.xlu0 %v387, 12
      %v578 = vpop.permute.xlu0 %577
      %579 = vrot.lane.b32.xlu0 %v388, 12
      %v580 = vpop.permute.xlu0 %579
      %581 = vrot.lane.b32.xlu0 %v389, 12
      %v582 = vpop.permute.xlu0 %581
      %583 = vrot.lane.b32.xlu0 %v390, 12
      %v584 = vpop.permute.xlu0 %583
      %585 = vrot.lane.b32.xlu0 %v391, 12
      %v586 = vpop.permute.xlu0 %585
      %587 = vrot.lane.b32.xlu0 %v392, 12
      %v588 = vpop.permute.xlu0 %587
      %589 = vrot.lane.b32.xlu0 %v393, 12
      %v590 = vpop.permute.xlu0 %589
      %591 = vrot.lane.b32.xlu0 %v394, 12
      %v592 = vpop.permute.xlu0 %591
      %593 = vrot.lane.b32.xlu0 %v395, 12
      %v594 = vpop.permute.xlu0 %593
      %595 = vrot.lane.b32.xlu0 %v568, 12
      %v596 = vpop.permute.xlu0 %595
      %v598 = vshrl.u32 %v568, 16
      %v600 = vshll.u32 %v568, 16
      %v602 = vrot.slane %v600, 1
      %v603 = vor.u32 %v598, %v602
      %604 = vrot.lane.b32.xlu0 %v409, 16
      %v605 = vpop.permute.xlu0 %604
      %606 = vrot.lane.b32.xlu0 %v416, 16
      %v607 = vpop.permute.xlu0 %606
      %608 = vrot.lane.b32.xlu0 %v423, 16
      %v609 = vpop.permute.xlu0 %608
      %610 = vrot.lane.b32.xlu0 %v430, 16
      %v611 = vpop.permute.xlu0 %610
      %612 = vrot.lane.b32.xlu0 %v437, 16
      %v613 = vpop.permute.xlu0 %612
      %614 = vrot.lane.b32.xlu0 %v444, 16
      %v615 = vpop.permute.xlu0 %614
      %616 = vrot.lane.b32.xlu0 %v451, 16
      %v617 = vpop.permute.xlu0 %616
      %618 = vrot.lane.b32.xlu0 %v458, 16
      %v619 = vpop.permute.xlu0 %618
      %620 = vrot.lane.b32.xlu0 %v465, 16
      %v621 = vpop.permute.xlu0 %620
      %622 = vrot.lane.b32.xlu0 %v472, 16
      %v623 = vpop.permute.xlu0 %622
      %624 = vrot.lane.b32.xlu0 %v479, 16
      %v625 = vpop.permute.xlu0 %624
      %626 = vrot.lane.b32.xlu0 %v486, 16
      %v627 = vpop.permute.xlu0 %626
      %628 = vrot.lane.b32.xlu0 %v493, 16
      %v629 = vpop.permute.xlu0 %628
      %630 = vrot.lane.b32.xlu0 %v603, 16
      %v631 = vpop.permute.xlu0 %630
      %v632 = vrot.slane %v568, 1
      %633 = vrot.lane.b32.xlu0 %v523, 20
      %v634 = vpop.permute.xlu0 %633
      %635 = vrot.lane.b32.xlu0 %v524, 20
      %v636 = vpop.permute.xlu0 %635
      %637 = vrot.lane.b32.xlu0 %v525, 20
      %v638 = vpop.permute.xlu0 %637
      %639 = vrot.lane.b32.xlu0 %v526, 20
      %v640 = vpop.permute.xlu0 %639
      %641 = vrot.lane.b32.xlu0 %v527, 20
      %v642 = vpop.permute.xlu0 %641
      %643 = vrot.lane.b32.xlu0 %v528, 20
      %v644 = vpop.permute.xlu0 %643
      %645 = vrot.lane.b32.xlu0 %v529, 20
      %v646 = vpop.permute.xlu0 %645
      %647 = vrot.lane.b32.xlu0 %v530, 20
      %v648 = vpop.permute.xlu0 %647
      %649 = vrot.lane.b32.xlu0 %v531, 20
      %v650 = vpop.permute.xlu0 %649
      %651 = vrot.lane.b32.xlu0 %v532, 20
      %v652 = vpop.permute.xlu0 %651
      %653 = vrot.lane.b32.xlu0 %v533, 20
      %v654 = vpop.permute.xlu0 %653
      %655 = vrot.lane.b32.xlu0 %v534, 20
      %v656 = vpop.permute.xlu0 %655
      %657 = vrot.lane.b32.xlu0 %v535, 20
      %v658 = vpop.permute.xlu0 %657
      %659 = vrot.lane.b32.xlu0 %v632, 20
      %v660 = vpop.permute.xlu0 %659
      %v663 = vunpack.c.l.b16 %v324
      %v664 = vunpack.c.l.b16 %v325
      %v665 = vpack.c.b16 %v664, %v663
      %666 = vrot.lane.b32.xlu0 %v384, 24
      %v667 = vpop.permute.xlu0 %666
      %668 = vrot.lane.b32.xlu0 %v385, 24
      %v669 = vpop.permute.xlu0 %668
      %670 = vrot.lane.b32.xlu0 %v386, 24
      %v671 = vpop.permute.xlu0 %670
      %672 = vrot.lane.b32.xlu0 %v387, 24
      %v673 = vpop.permute.xlu0 %672
      %674 = vrot.lane.b32.xlu0 %v388, 24
      %v675 = vpop.permute.xlu0 %674
      %676 = vrot.lane.b32.xlu0 %v389, 24
      %v677 = vpop.permute.xlu0 %676
      %678 = vrot.lane.b32.xlu0 %v390, 24
      %v679 = vpop.permute.xlu0 %678
      %680 = vrot.lane.b32.xlu0 %v391, 24
      %v681 = vpop.permute.xlu0 %680
      %682 = vrot.lane.b32.xlu0 %v392, 24
      %v683 = vpop.permute.xlu0 %682
      %684 = vrot.lane.b32.xlu0 %v393, 24
      %v685 = vpop.permute.xlu0 %684
      %686 = vrot.lane.b32.xlu0 %v394, 24
      %v687 = vpop.permute.xlu0 %686
      %688 = vrot.lane.b32.xlu0 %v395, 24
      %v689 = vpop.permute.xlu0 %688
      %690 = vrot.lane.b32.xlu0 %v568, 24
      %v691 = vpop.permute.xlu0 %690
      %692 = vrot.lane.b32.xlu0 %v665, 24
      %v693 = vpop.permute.xlu0 %692
      %v695 = vshrl.u32 %v665, 16
      %v697 = vshll.u32 %v665, 16
      %v699 = vrot.slane %v697, 1
      %v700 = vor.u32 %v695, %v699
      %701 = vrot.lane.b32.xlu0 %v416, 28
      %v702 = vpop.permute.xlu0 %701
      %703 = vrot.lane.b32.xlu0 %v423, 28
      %v704 = vpop.permute.xlu0 %703
      %705 = vrot.lane.b32.xlu0 %v430, 28
      %v706 = vpop.permute.xlu0 %705
      %707 = vrot.lane.b32.xlu0 %v437, 28
      %v708 = vpop.permute.xlu0 %707
      %709 = vrot.lane.b32.xlu0 %v444, 28
      %v710 = vpop.permute.xlu0 %709
      %711 = vrot.lane.b32.xlu0 %v451, 28
      %v712 = vpop.permute.xlu0 %711
      %713 = vrot.lane.b32.xlu0 %v458, 28
      %v714 = vpop.permute.xlu0 %713
      %715 = vrot.lane.b32.xlu0 %v465, 28
      %v716 = vpop.permute.xlu0 %715
      %717 = vrot.lane.b32.xlu0 %v472, 28
      %v718 = vpop.permute.xlu0 %717
      %719 = vrot.lane.b32.xlu0 %v479, 28
      %v720 = vpop.permute.xlu0 %719
      %721 = vrot.lane.b32.xlu0 %v486, 28
      %v722 = vpop.permute.xlu0 %721
      %723 = vrot.lane.b32.xlu0 %v493, 28
      %v724 = vpop.permute.xlu0 %723
      %725 = vrot.lane.b32.xlu0 %v603, 28
      %v726 = vpop.permute.xlu0 %725
      %727 = vrot.lane.b32.xlu0 %v700, 28
      %v728 = vpop.permute.xlu0 %727
      %v729 = vrot.slane %v665, 1
      %730 = vrot.lane.b32.xlu0 %v524, 32
      %v731 = vpop.permute.xlu0 %730
      %732 = vrot.lane.b32.xlu0 %v525, 32
      %v733 = vpop.permute.xlu0 %732
      %734 = vrot.lane.b32.xlu0 %v526, 32
      %v735 = vpop.permute.xlu0 %734
      %736 = vrot.lane.b32.xlu0 %v527, 32
      %v737 = vpop.permute.xlu0 %736
      %738 = vrot.lane.b32.xlu0 %v528, 32
      %v739 = vpop.permute.xlu0 %738
      %740 = vrot.lane.b32.xlu0 %v529, 32
      %v741 = vpop.permute.xlu0 %740
      %742 = vrot.lane.b32.xlu0 %v530, 32
      %v743 = vpop.permute.xlu0 %742
      %744 = vrot.lane.b32.xlu0 %v531, 32
      %v745 = vpop.permute.xlu0 %744
      %746 = vrot.lane.b32.xlu0 %v532, 32
      %v747 = vpop.permute.xlu0 %746
      %748 = vrot.lane.b32.xlu0 %v533, 32
      %v749 = vpop.permute.xlu0 %748
      %750 = vrot.lane.b32.xlu0 %v534, 32
      %v751 = vpop.permute.xlu0 %750
      %752 = vrot.lane.b32.xlu0 %v535, 32
      %v753 = vpop.permute.xlu0 %752
      %754 = vrot.lane.b32.xlu0 %v632, 32
      %v755 = vpop.permute.xlu0 %754
      %756 = vrot.lane.b32.xlu0 %v729, 32
      %v757 = vpop.permute.xlu0 %756
      %vm758 = vcmask 31744
      %v760 = vsel %vm758, %v382, %v495
      %v762 = vsel %vm758, %v383, %v497
      %v764 = vsel %vm758, %v384, %v499
      %v766 = vsel %vm758, %v385, %v501
      %v768 = vsel %vm758, %v386, %v503
      %v770 = vsel %vm758, %v387, %v505
      %v772 = vsel %vm758, %v388, %v507
      %v774 = vsel %vm758, %v389, %v509
      %v776 = vsel %vm758, %v390, %v511
      %v778 = vsel %vm758, %v391, %v513
      %v780 = vsel %vm758, %v392, %v515
      %v782 = vsel %vm758, %v393, %v517
      %v784 = vsel %vm758, %v394, %v519
      %v786 = vsel %vm758, %v395, %v521
      %vm787 = vcmask 64512
      %v789 = vsel %vm787, %v760, %v537
      %v791 = vsel %vm787, %v762, %v539
      %v793 = vsel %vm787, %v764, %v541
      %v795 = vsel %vm787, %v766, %v543
      %v797 = vsel %vm787, %v768, %v545
      %v799 = vsel %vm787, %v770, %v547
      %v801 = vsel %vm787, %v772, %v549
      %v803 = vsel %vm787, %v774, %v551
      %v805 = vsel %vm787, %v776, %v553
      %v807 = vsel %vm787, %v778, %v555
      %v809 = vsel %vm787, %v780, %v557
      %v811 = vsel %vm787, %v782, %v559
      %v813 = vsel %vm787, %v784, %v561
      %v815 = vsel %vm787, %v786, %v563
      %vm816 = vcmask 97280
      %v818 = vsel %vm816, %v789, %v570
      %v820 = vsel %vm816, %v791, %v572
      %v822 = vsel %vm816, %v793, %v574
      %v824 = vsel %vm816, %v795, %v576
      %v826 = vsel %vm816, %v797, %v578
      %v828 = vsel %vm816, %v799, %v580
      %v830 = vsel %vm816, %v801, %v582
      %v832 = vsel %vm816, %v803, %v584
      %v834 = vsel %vm816, %v805, %v586
      %v836 = vsel %vm816, %v807, %v588
      %v838 = vsel %vm816, %v809, %v590
      %v840 = vsel %vm816, %v811, %v592
      %v842 = vsel %vm816, %v813, %v594
      %v844 = vsel %vm816, %v815, %v596
      %vm845 = vcmask 130048
      %v847 = vsel %vm845, %v818, %v605
      %v849 = vsel %vm845, %v820, %v607
      %v851 = vsel %vm845, %v822, %v609
      %v853 = vsel %vm845, %v824, %v611
      %v855 = vsel %vm845, %v826, %v613
      %v857 = vsel %vm845, %v828, %v615
      %v859 = vsel %vm845, %v830, %v617
      %v861 = vsel %vm845, %v832, %v619
      %v863 = vsel %vm845, %v834, %v621
      %v865 = vsel %vm845, %v836, %v623
      %v867 = vsel %vm845, %v838, %v625
      %v869 = vsel %vm845, %v840, %v627
      %v871 = vsel %vm845, %v842, %v629
      %v873 = vsel %vm845, %v844, %v631
      %vm874 = vcmask 162816
      %v876 = vsel %vm874, %v847, %v634
      %v878 = vsel %vm874, %v849, %v636
      %v880 = vsel %vm874, %v851, %v638
      %v882 = vsel %vm874, %v853, %v640
      %v884 = vsel %vm874, %v855, %v642
      %v886 = vsel %vm874, %v857, %v644
      %v888 = vsel %vm874, %v859, %v646
      %v890 = vsel %vm874, %v861, %v648
      %v892 = vsel %vm874, %v863, %v650
      %v894 = vsel %vm874, %v865, %v652
      %v896 = vsel %vm874, %v867, %v654
      %v898 = vsel %vm874, %v869, %v656
      %v900 = vsel %vm874, %v871, %v658
      %v902 = vsel %vm874, %v873, %v660
      %vm903 = vcmask 195584
      %v905 = vsel %vm903, %v876, %v667
      %v907 = vsel %vm903, %v878, %v669
      %v909 = vsel %vm903, %v880, %v671
      %v911 = vsel %vm903, %v882, %v673
      %v913 = vsel %vm903, %v884, %v675
      %v915 = vsel %vm903, %v886, %v677
      %v917 = vsel %vm903, %v888, %v679
      %v919 = vsel %vm903, %v890, %v681
      %v921 = vsel %vm903, %v892, %v683
      %v923 = vsel %vm903, %v894, %v685
      %v925 = vsel %vm903, %v896, %v687
      %v927 = vsel %vm903, %v898, %v689
      %v929 = vsel %vm903, %v900, %v691
      %v931 = vsel %vm903, %v902, %v693
      %vm932 = vcmask 228352
      %v934 = vsel %vm932, %v905, %v702
      %v936 = vsel %vm932, %v907, %v704
      %v938 = vsel %vm932, %v909, %v706
      %v940 = vsel %vm932, %v911, %v708
      %v942 = vsel %vm932, %v913, %v710
      %v944 = vsel %vm932, %v915, %v712
      %v946 = vsel %vm932, %v917, %v714
      %v948 = vsel %vm932, %v919, %v716
      %v950 = vsel %vm932, %v921, %v718
      %v952 = vsel %vm932, %v923, %v720
      %v954 = vsel %vm932, %v925, %v722
      %v956 = vsel %vm932, %v927, %v724
      %v958 = vsel %vm932, %v929, %v726
      %v960 = vsel %vm932, %v931, %v728
      %vm961 = vcmask 261120
      %v963 = vsel %vm961, %v934, %v731
      %v965 = vsel %vm961, %v936, %v733
      %v967 = vsel %vm961, %v938, %v735
      %v969 = vsel %vm961, %v940, %v737
      %v971 = vsel %vm961, %v942, %v739
      %v973 = vsel %vm961, %v944, %v741
      %v975 = vsel %vm961, %v946, %v743
      %v977 = vsel %vm961, %v948, %v745
      %v979 = vsel %vm961, %v950, %v747
      %v981 = vsel %vm961, %v952, %v749
      %v983 = vsel %vm961, %v954, %v751
      %v985 = vsel %vm961, %v956, %v753
      %v987 = vsel %vm961, %v958, %v755
      %v989 = vsel %vm961, %v960, %v757
      %v1004 = vcombine.high %v963, %v963
      %v1006 = vunpack.c.l.s4 1966171168
      %v1007 = vunpack.c.0.s8 %v1006
      %v1008 = vlaneseq
      %v1009 = vshrl.u32 %v1008, 7
      %v1010 = vsub.s32 %v1007, %v1009
      %v1011 = vrot.slane %v963, %v1010
      %v1013 = vunpack.c.l.s4 1966171168
      %v1014 = vunpack.c.0.s8 %v1013
      %v1015 = vlaneseq
      %v1016 = vshrl.u32 %v1015, 7
      %v1017 = vsub.s32 %v1014, %v1016
      %v1018 = vrot.slane %v1004, %v1017
      %v1019 = vcombine.high %v1011, %v1011
      %v1020 = vcombine.high %v1018, %v1018
      %v1022 = vunpack.c.l.s4 1966171168
      %v1023 = vunpack.c.0.s8 %v1022
      %v1024 = vlaneseq
      %v1025 = vshrl.u32 %v1024, 7
      %v1026 = vsub.s32 %v1023, %v1025
      %v1027 = vrot.slane %v1011, %v1026
      %v1029 = vunpack.c.l.s4 1966171168
      %v1030 = vunpack.c.0.s8 %v1029
      %v1031 = vlaneseq
      %v1032 = vshrl.u32 %v1031, 7
      %v1033 = vsub.s32 %v1030, %v1032
      %v1034 = vrot.slane %v1018, %v1033
      %v1036 = vunpack.c.l.s4 1966171168
      %v1037 = vunpack.c.0.s8 %v1036
      %v1038 = vlaneseq
      %v1039 = vshrl.u32 %v1038, 7
      %v1040 = vsub.s32 %v1037, %v1039
      %v1041 = vrot.slane %v1019, %v1040
      %v1043 = vunpack.c.l.s4 1966171168
      %v1044 = vunpack.c.0.s8 %v1043
      %v1045 = vlaneseq
      %v1046 = vshrl.u32 %v1045, 7
      %v1047 = vsub.s32 %v1044, %v1046
      %v1048 = vrot.slane %v1020, %v1047
      %v1049 = vcombine.high %v1027, %v1027
      %v1050 = vcombine.high %v1034, %v1034
      %v1051 = vcombine.high %v1041, %v1041
      %v1052 = vcombine.high %v965, %v965
      %v1054 = vunpack.c.l.s4 1966171168
      %v1055 = vunpack.c.0.s8 %v1054
      %v1056 = vlaneseq
      %v1057 = vshrl.u32 %v1056, 7
      %v1058 = vsub.s32 %v1055, %v1057
      %v1059 = vrot.slane %v965, %v1058
      %v1061 = vunpack.c.l.s4 1966171168
      %v1062 = vunpack.c.0.s8 %v1061
      %v1063 = vlaneseq
      %v1064 = vshrl.u32 %v1063, 7
      %v1065 = vsub.s32 %v1062, %v1064
      %v1066 = vrot.slane %v1052, %v1065
      %v1067 = vcombine.high %v1059, %v1059
      %v1068 = vcombine.high %v1066, %v1066
      %v1070 = vunpack.c.l.s4 1966171168
      %v1071 = vunpack.c.0.s8 %v1070
      %v1072 = vlaneseq
      %v1073 = vshrl.u32 %v1072, 7
      %v1074 = vsub.s32 %v1071, %v1073
      %v1075 = vrot.slane %v1059, %v1074
      %v1077 = vunpack.c.l.s4 1966171168
      %v1078 = vunpack.c.0.s8 %v1077
      %v1079 = vlaneseq
      %v1080 = vshrl.u32 %v1079, 7
      %v1081 = vsub.s32 %v1078, %v1080
      %v1082 = vrot.slane %v1066, %v1081
      %v1084 = vunpack.c.l.s4 1966171168
      %v1085 = vunpack.c.0.s8 %v1084
      %v1086 = vlaneseq
      %v1087 = vshrl.u32 %v1086, 7
      %v1088 = vsub.s32 %v1085, %v1087
      %v1089 = vrot.slane %v1067, %v1088
      %v1091 = vunpack.c.l.s4 1966171168
      %v1092 = vunpack.c.0.s8 %v1091
      %v1093 = vlaneseq
      %v1094 = vshrl.u32 %v1093, 7
      %v1095 = vsub.s32 %v1092, %v1094
      %v1096 = vrot.slane %v1068, %v1095
      %v1097 = vcombine.high %v1075, %v1075
      %v1098 = vcombine.high %v1082, %v1082
      %v1099 = vcombine.high %v1089, %v1089
      %v1100 = vcombine.high %v967, %v967
      %v1102 = vunpack.c.l.s4 1966171168
      %v1103 = vunpack.c.0.s8 %v1102
      %v1104 = vlaneseq
      %v1105 = vshrl.u32 %v1104, 7
      %v1106 = vsub.s32 %v1103, %v1105
      %v1107 = vrot.slane %v967, %v1106
      %v1109 = vunpack.c.l.s4 1966171168
      %v1110 = vunpack.c.0.s8 %v1109
      %v1111 = vlaneseq
      %v1112 = vshrl.u32 %v1111, 7
      %v1113 = vsub.s32 %v1110, %v1112
      %v1114 = vrot.slane %v1100, %v1113
      %v1115 = vcombine.high %v1107, %v1107
      %v1116 = vcombine.high %v1114, %v1114
      %v1118 = vunpack.c.l.s4 1966171168
      %v1119 = vunpack.c.0.s8 %v1118
      %v1120 = vlaneseq
      %v1121 = vshrl.u32 %v1120, 7
      %v1122 = vsub.s32 %v1119, %v1121
      %v1123 = vrot.slane %v1107, %v1122
      %v1125 = vunpack.c.l.s4 1966171168
      %v1126 = vunpack.c.0.s8 %v1125
      %v1127 = vlaneseq
      %v1128 = vshrl.u32 %v1127, 7
      %v1129 = vsub.s32 %v1126, %v1128
      %v1130 = vrot.slane %v1114, %v1129
      %v1132 = vunpack.c.l.s4 1966171168
      %v1133 = vunpack.c.0.s8 %v1132
      %v1134 = vlaneseq
      %v1135 = vshrl.u32 %v1134, 7
      %v1136 = vsub.s32 %v1133, %v1135
      %v1137 = vrot.slane %v1115, %v1136
      %v1139 = vunpack.c.l.s4 1966171168
      %v1140 = vunpack.c.0.s8 %v1139
      %v1141 = vlaneseq
      %v1142 = vshrl.u32 %v1141, 7
      %v1143 = vsub.s32 %v1140, %v1142
      %v1144 = vrot.slane %v1116, %v1143
      %v1145 = vcombine.high %v1123, %v1123
      %v1146 = vcombine.high %v1130, %v1130
      %v1147 = vcombine.high %v1137, %v1137
      %v1148 = vcombine.high %v969, %v969
      %v1150 = vunpack.c.l.s4 1966171168
      %v1151 = vunpack.c.0.s8 %v1150
      %v1152 = vlaneseq
      %v1153 = vshrl.u32 %v1152, 7
      %v1154 = vsub.s32 %v1151, %v1153
      %v1155 = vrot.slane %v969, %v1154
      %v1157 = vunpack.c.l.s4 1966171168
      %v1158 = vunpack.c.0.s8 %v1157
      %v1159 = vlaneseq
      %v1160 = vshrl.u32 %v1159, 7
      %v1161 = vsub.s32 %v1158, %v1160
      %v1162 = vrot.slane %v1148, %v1161
      %v1163 = vcombine.high %v1155, %v1155
      %v1164 = vcombine.high %v1162, %v1162
      %v1166 = vunpack.c.l.s4 1966171168
      %v1167 = vunpack.c.0.s8 %v1166
      %v1168 = vlaneseq
      %v1169 = vshrl.u32 %v1168, 7
      %v1170 = vsub.s32 %v1167, %v1169
      %v1171 = vrot.slane %v1155, %v1170
      %v1173 = vunpack.c.l.s4 1966171168
      %v1174 = vunpack.c.0.s8 %v1173
      %v1175 = vlaneseq
      %v1176 = vshrl.u32 %v1175, 7
      %v1177 = vsub.s32 %v1174, %v1176
      %v1178 = vrot.slane %v1162, %v1177
      %v1180 = vunpack.c.l.s4 1966171168
      %v1181 = vunpack.c.0.s8 %v1180
      %v1182 = vlaneseq
      %v1183 = vshrl.u32 %v1182, 7
      %v1184 = vsub.s32 %v1181, %v1183
      %v1185 = vrot.slane %v1163, %v1184
      %v1187 = vunpack.c.l.s4 1966171168
      %v1188 = vunpack.c.0.s8 %v1187
      %v1189 = vlaneseq
      %v1190 = vshrl.u32 %v1189, 7
      %v1191 = vsub.s32 %v1188, %v1190
      %v1192 = vrot.slane %v1164, %v1191
      %v1193 = vcombine.high %v1171, %v1171
      %v1194 = vcombine.high %v1178, %v1178
      %v1195 = vcombine.high %v1185, %v1185
      %v1196 = vcombine.high %v971, %v971
      %v1198 = vunpack.c.l.s4 1966171168
      %v1199 = vunpack.c.0.s8 %v1198
      %v1200 = vlaneseq
      %v1201 = vshrl.u32 %v1200, 7
      %v1202 = vsub.s32 %v1199, %v1201
      %v1203 = vrot.slane %v971, %v1202
      %v1205 = vunpack.c.l.s4 1966171168
      %v1206 = vunpack.c.0.s8 %v1205
      %v1207 = vlaneseq
      %v1208 = vshrl.u32 %v1207, 7
      %v1209 = vsub.s32 %v1206, %v1208
      %v1210 = vrot.slane %v1196, %v1209
      %v1211 = vcombine.high %v1203, %v1203
      %v1212 = vcombine.high %v1210, %v1210
      %v1214 = vunpack.c.l.s4 1966171168
      %v1215 = vunpack.c.0.s8 %v1214
      %v1216 = vlaneseq
      %v1217 = vshrl.u32 %v1216, 7
      %v1218 = vsub.s32 %v1215, %v1217
      %v1219 = vrot.slane %v1203, %v1218
      %v1221 = vunpack.c.l.s4 1966171168
      %v1222 = vunpack.c.0.s8 %v1221
      %v1223 = vlaneseq
      %v1224 = vshrl.u32 %v1223, 7
      %v1225 = vsub.s32 %v1222, %v1224
      %v1226 = vrot.slane %v1210, %v1225
      %v1228 = vunpack.c.l.s4 1966171168
      %v1229 = vunpack.c.0.s8 %v1228
      %v1230 = vlaneseq
      %v1231 = vshrl.u32 %v1230, 7
      %v1232 = vsub.s32 %v1229, %v1231
      %v1233 = vrot.slane %v1211, %v1232
      %v1235 = vunpack.c.l.s4 1966171168
      %v1236 = vunpack.c.0.s8 %v1235
      %v1237 = vlaneseq
      %v1238 = vshrl.u32 %v1237, 7
      %v1239 = vsub.s32 %v1236, %v1238
      %v1240 = vrot.slane %v1212, %v1239
      %v1241 = vcombine.high %v1219, %v1219
      %v1242 = vcombine.high %v1226, %v1226
      %v1243 = vcombine.high %v1233, %v1233
      %v1244 = vcombine.high %v973, %v973
      %v1246 = vunpack.c.l.s4 1966171168
      %v1247 = vunpack.c.0.s8 %v1246
      %v1248 = vlaneseq
      %v1249 = vshrl.u32 %v1248, 7
      %v1250 = vsub.s32 %v1247, %v1249
      %v1251 = vrot.slane %v973, %v1250
      %v1253 = vunpack.c.l.s4 1966171168
      %v1254 = vunpack.c.0.s8 %v1253
      %v1255 = vlaneseq
      %v1256 = vshrl.u32 %v1255, 7
      %v1257 = vsub.s32 %v1254, %v1256
      %v1258 = vrot.slane %v1244, %v1257
      %v1259 = vcombine.high %v1251, %v1251
      %v1260 = vcombine.high %v1258, %v1258
      %v1262 = vunpack.c.l.s4 1966171168
      %v1263 = vunpack.c.0.s8 %v1262
      %v1264 = vlaneseq
      %v1265 = vshrl.u32 %v1264, 7
      %v1266 = vsub.s32 %v1263, %v1265
      %v1267 = vrot.slane %v1251, %v1266
      %v1269 = vunpack.c.l.s4 1966171168
      %v1270 = vunpack.c.0.s8 %v1269
      %v1271 = vlaneseq
      %v1272 = vshrl.u32 %v1271, 7
      %v1273 = vsub.s32 %v1270, %v1272
      %v1274 = vrot.slane %v1258, %v1273
      %v1276 = vunpack.c.l.s4 1966171168
      %v1277 = vunpack.c.0.s8 %v1276
      %v1278 = vlaneseq
      %v1279 = vshrl.u32 %v1278, 7
      %v1280 = vsub.s32 %v1277, %v1279
      %v1281 = vrot.slane %v1259, %v1280
      %v1283 = vunpack.c.l.s4 1966171168
      %v1284 = vunpack.c.0.s8 %v1283
      %v1285 = vlaneseq
      %v1286 = vshrl.u32 %v1285, 7
      %v1287 = vsub.s32 %v1284, %v1286
      %v1288 = vrot.slane %v1260, %v1287
      %v1289 = vcombine.high %v1267, %v1267
      %v1290 = vcombine.high %v1274, %v1274
      %v1291 = vcombine.high %v1281, %v1281
      %v1292 = vcombine.high %v975, %v975
      %v1294 = vunpack.c.l.s4 1966171168
      %v1295 = vunpack.c.0.s8 %v1294
      %v1296 = vlaneseq
      %v1297 = vshrl.u32 %v1296, 7
      %v1298 = vsub.s32 %v1295, %v1297
      %v1299 = vrot.slane %v975, %v1298
      %v1301 = vunpack.c.l.s4 1966171168
      %v1302 = vunpack.c.0.s8 %v1301
      %v1303 = vlaneseq
      %v1304 = vshrl.u32 %v1303, 7
      %v1305 = vsub.s32 %v1302, %v1304
      %v1306 = vrot.slane %v1292, %v1305
      %v1307 = vcombine.high %v1299, %v1299
      %v1308 = vcombine.high %v1306, %v1306
      %v1310 = vunpack.c.l.s4 1966171168
      %v1311 = vunpack.c.0.s8 %v1310
      %v1312 = vlaneseq
      %v1313 = vshrl.u32 %v1312, 7
      %v1314 = vsub.s32 %v1311, %v1313
      %v1315 = vrot.slane %v1299, %v1314
      %v1317 = vunpack.c.l.s4 1966171168
      %v1318 = vunpack.c.0.s8 %v1317
      %v1319 = vlaneseq
      %v1320 = vshrl.u32 %v1319, 7
      %v1321 = vsub.s32 %v1318, %v1320
      %v1322 = vrot.slane %v1306, %v1321
      %v1324 = vunpack.c.l.s4 1966171168
      %v1325 = vunpack.c.0.s8 %v1324
      %v1326 = vlaneseq
      %v1327 = vshrl.u32 %v1326, 7
      %v1328 = vsub.s32 %v1325, %v1327
      %v1329 = vrot.slane %v1307, %v1328
      %v1331 = vunpack.c.l.s4 1966171168
      %v1332 = vunpack.c.0.s8 %v1331
      %v1333 = vlaneseq
      %v1334 = vshrl.u32 %v1333, 7
      %v1335 = vsub.s32 %v1332, %v1334
      %v1336 = vrot.slane %v1308, %v1335
      %v1337 = vcombine.high %v1315, %v1315
      %v1338 = vcombine.high %v1322, %v1322
      %v1339 = vcombine.high %v1329, %v1329
      %v1340 = vcombine.high %v977, %v977
      %v1342 = vunpack.c.l.s4 1966171168
      %v1343 = vunpack.c.0.s8 %v1342
      %v1344 = vlaneseq
      %v1345 = vshrl.u32 %v1344, 7
      %v1346 = vsub.s32 %v1343, %v1345
      %v1347 = vrot.slane %v977, %v1346
      %v1349 = vunpack.c.l.s4 1966171168
      %v1350 = vunpack.c.0.s8 %v1349
      %v1351 = vlaneseq
      %v1352 = vshrl.u32 %v1351, 7
      %v1353 = vsub.s32 %v1350, %v1352
      %v1354 = vrot.slane %v1340, %v1353
      %v1355 = vcombine.high %v1347, %v1347
      %v1356 = vcombine.high %v1354, %v1354
      %v1358 = vunpack.c.l.s4 1966171168
      %v1359 = vunpack.c.0.s8 %v1358
      %v1360 = vlaneseq
      %v1361 = vshrl.u32 %v1360, 7
      %v1362 = vsub.s32 %v1359, %v1361
      %v1363 = vrot.slane %v1347, %v1362
      %v1365 = vunpack.c.l.s4 1966171168
      %v1366 = vunpack.c.0.s8 %v1365
      %v1367 = vlaneseq
      %v1368 = vshrl.u32 %v1367, 7
      %v1369 = vsub.s32 %v1366, %v1368
      %v1370 = vrot.slane %v1354, %v1369
      %v1372 = vunpack.c.l.s4 1966171168
      %v1373 = vunpack.c.0.s8 %v1372
      %v1374 = vlaneseq
      %v1375 = vshrl.u32 %v1374, 7
      %v1376 = vsub.s32 %v1373, %v1375
      %v1377 = vrot.slane %v1355, %v1376
      %v1379 = vunpack.c.l.s4 1966171168
      %v1380 = vunpack.c.0.s8 %v1379
      %v1381 = vlaneseq
      %v1382 = vshrl.u32 %v1381, 7
      %v1383 = vsub.s32 %v1380, %v1382
      %v1384 = vrot.slane %v1356, %v1383
      %v1385 = vcombine.high %v1363, %v1363
      %v1386 = vcombine.high %v1370, %v1370
      %v1387 = vcombine.high %v1377, %v1377
      %v1388 = vcombine.high %v979, %v979
      %v1390 = vunpack.c.l.s4 1966171168
      %v1391 = vunpack.c.0.s8 %v1390
      %v1392 = vlaneseq
      %v1393 = vshrl.u32 %v1392, 7
      %v1394 = vsub.s32 %v1391, %v1393
      %v1395 = vrot.slane %v979, %v1394
      %v1397 = vunpack.c.l.s4 1966171168
      %v1398 = vunpack.c.0.s8 %v1397
      %v1399 = vlaneseq
      %v1400 = vshrl.u32 %v1399, 7
      %v1401 = vsub.s32 %v1398, %v1400
      %v1402 = vrot.slane %v1388, %v1401
      %v1403 = vcombine.high %v1395, %v1395
      %v1404 = vcombine.high %v1402, %v1402
      %v1406 = vunpack.c.l.s4 1966171168
      %v1407 = vunpack.c.0.s8 %v1406
      %v1408 = vlaneseq
      %v1409 = vshrl.u32 %v1408, 7
      %v1410 = vsub.s32 %v1407, %v1409
      %v1411 = vrot.slane %v1395, %v1410
      %v1413 = vunpack.c.l.s4 1966171168
      %v1414 = vunpack.c.0.s8 %v1413
      %v1415 = vlaneseq
      %v1416 = vshrl.u32 %v1415, 7
      %v1417 = vsub.s32 %v1414, %v1416
      %v1418 = vrot.slane %v1402, %v1417
      %v1420 = vunpack.c.l.s4 1966171168
      %v1421 = vunpack.c.0.s8 %v1420
      %v1422 = vlaneseq
      %v1423 = vshrl.u32 %v1422, 7
      %v1424 = vsub.s32 %v1421, %v1423
      %v1425 = vrot.slane %v1403, %v1424
      %v1427 = vunpack.c.l.s4 1966171168
      %v1428 = vunpack.c.0.s8 %v1427
      %v1429 = vlaneseq
      %v1430 = vshrl.u32 %v1429, 7
      %v1431 = vsub.s32 %v1428, %v1430
      %v1432 = vrot.slane %v1404, %v1431
      %v1433 = vcombine.high %v1411, %v1411
      %v1434 = vcombine.high %v1418, %v1418
      %v1435 = vcombine.high %v1425, %v1425
      %v1436 = vcombine.high %v981, %v981
      %v1438 = vunpack.c.l.s4 1966171168
      %v1439 = vunpack.c.0.s8 %v1438
      %v1440 = vlaneseq
      %v1441 = vshrl.u32 %v1440, 7
      %v1442 = vsub.s32 %v1439, %v1441
      %v1443 = vrot.slane %v981, %v1442
      %v1445 = vunpack.c.l.s4 1966171168
      %v1446 = vunpack.c.0.s8 %v1445
      %v1447 = vlaneseq
      %v1448 = vshrl.u32 %v1447, 7
      %v1449 = vsub.s32 %v1446, %v1448
      %v1450 = vrot.slane %v1436, %v1449
      %v1451 = vcombine.high %v1443, %v1443
      %v1452 = vcombine.high %v1450, %v1450
      %v1454 = vunpack.c.l.s4 1966171168
      %v1455 = vunpack.c.0.s8 %v1454
      %v1456 = vlaneseq
      %v1457 = vshrl.u32 %v1456, 7
      %v1458 = vsub.s32 %v1455, %v1457
      %v1459 = vrot.slane %v1443, %v1458
      %v1461 = vunpack.c.l.s4 1966171168
      %v1462 = vunpack.c.0.s8 %v1461
      %v1463 = vlaneseq
      %v1464 = vshrl.u32 %v1463, 7
      %v1465 = vsub.s32 %v1462, %v1464
      %v1466 = vrot.slane %v1450, %v1465
      %v1468 = vunpack.c.l.s4 1966171168
      %v1469 = vunpack.c.0.s8 %v1468
      %v1470 = vlaneseq
      %v1471 = vshrl.u32 %v1470, 7
      %v1472 = vsub.s32 %v1469, %v1471
      %v1473 = vrot.slane %v1451, %v1472
      %v1475 = vunpack.c.l.s4 1966171168
      %v1476 = vunpack.c.0.s8 %v1475
      %v1477 = vlaneseq
      %v1478 = vshrl.u32 %v1477, 7
      %v1479 = vsub.s32 %v1476, %v1478
      %v1480 = vrot.slane %v1452, %v1479
      %v1481 = vcombine.high %v1459, %v1459
      %v1482 = vcombine.high %v1466, %v1466
      %v1483 = vcombine.high %v1473, %v1473
      %v1484 = vcombine.high %v983, %v983
      %v1486 = vunpack.c.l.s4 1966171168
      %v1487 = vunpack.c.0.s8 %v1486
      %v1488 = vlaneseq
      %v1489 = vshrl.u32 %v1488, 7
      %v1490 = vsub.s32 %v1487, %v1489
      %v1491 = vrot.slane %v983, %v1490
      %v1493 = vunpack.c.l.s4 1966171168
      %v1494 = vunpack.c.0.s8 %v1493
      %v1495 = vlaneseq
      %v1496 = vshrl.u32 %v1495, 7
      %v1497 = vsub.s32 %v1494, %v1496
      %v1498 = vrot.slane %v1484, %v1497
      %v1499 = vcombine.high %v1491, %v1491
      %v1500 = vcombine.high %v1498, %v1498
      %v1502 = vunpack.c.l.s4 1966171168
      %v1503 = vunpack.c.0.s8 %v1502
      %v1504 = vlaneseq
      %v1505 = vshrl.u32 %v1504, 7
      %v1506 = vsub.s32 %v1503, %v1505
      %v1507 = vrot.slane %v1491, %v1506
      %v1509 = vunpack.c.l.s4 1966171168
      %v1510 = vunpack.c.0.s8 %v1509
      %v1511 = vlaneseq
      %v1512 = vshrl.u32 %v1511, 7
      %v1513 = vsub.s32 %v1510, %v1512
      %v1514 = vrot.slane %v1498, %v1513
      %v1516 = vunpack.c.l.s4 1966171168
      %v1517 = vunpack.c.0.s8 %v1516
      %v1518 = vlaneseq
      %v1519 = vshrl.u32 %v1518, 7
      %v1520 = vsub.s32 %v1517, %v1519
      %v1521 = vrot.slane %v1499, %v1520
      %v1523 = vunpack.c.l.s4 1966171168
      %v1524 = vunpack.c.0.s8 %v1523
      %v1525 = vlaneseq
      %v1526 = vshrl.u32 %v1525, 7
      %v1527 = vsub.s32 %v1524, %v1526
      %v1528 = vrot.slane %v1500, %v1527
      %v1529 = vcombine.high %v1507, %v1507
      %v1530 = vcombine.high %v1514, %v1514
      %v1531 = vcombine.high %v1521, %v1521
      %v1532 = vcombine.high %v985, %v985
      %v1534 = vunpack.c.l.s4 1966171168
      %v1535 = vunpack.c.0.s8 %v1534
      %v1536 = vlaneseq
      %v1537 = vshrl.u32 %v1536, 7
      %v1538 = vsub.s32 %v1535, %v1537
      %v1539 = vrot.slane %v985, %v1538
      %v1541 = vunpack.c.l.s4 1966171168
      %v1542 = vunpack.c.0.s8 %v1541
      %v1543 = vlaneseq
      %v1544 = vshrl.u32 %v1543, 7
      %v1545 = vsub.s32 %v1542, %v1544
      %v1546 = vrot.slane %v1532, %v1545
      %v1547 = vcombine.high %v1539, %v1539
      %v1548 = vcombine.high %v1546, %v1546
      %v1550 = vunpack.c.l.s4 1966171168
      %v1551 = vunpack.c.0.s8 %v1550
      %v1552 = vlaneseq
      %v1553 = vshrl.u32 %v1552, 7
      %v1554 = vsub.s32 %v1551, %v1553
      %v1555 = vrot.slane %v1539, %v1554
      %v1557 = vunpack.c.l.s4 1966171168
      %v1558 = vunpack.c.0.s8 %v1557
      %v1559 = vlaneseq
      %v1560 = vshrl.u32 %v1559, 7
      %v1561 = vsub.s32 %v1558, %v1560
      %v1562 = vrot.slane %v1546, %v1561
      %v1564 = vunpack.c.l.s4 1966171168
      %v1565 = vunpack.c.0.s8 %v1564
      %v1566 = vlaneseq
      %v1567 = vshrl.u32 %v1566, 7
      %v1568 = vsub.s32 %v1565, %v1567
      %v1569 = vrot.slane %v1547, %v1568
      %v1571 = vunpack.c.l.s4 1966171168
      %v1572 = vunpack.c.0.s8 %v1571
      %v1573 = vlaneseq
      %v1574 = vshrl.u32 %v1573, 7
      %v1575 = vsub.s32 %v1572, %v1574
      %v1576 = vrot.slane %v1548, %v1575
      %v1577 = vcombine.high %v1555, %v1555
      %v1578 = vcombine.high %v1562, %v1562
      %v1579 = vcombine.high %v1569, %v1569
      %v1580 = vcombine.high %v987, %v987
      %v1582 = vunpack.c.l.s4 1966171168
      %v1583 = vunpack.c.0.s8 %v1582
      %v1584 = vlaneseq
      %v1585 = vshrl.u32 %v1584, 7
      %v1586 = vsub.s32 %v1583, %v1585
      %v1587 = vrot.slane %v987, %v1586
      %v1589 = vunpack.c.l.s4 1966171168
      %v1590 = vunpack.c.0.s8 %v1589
      %v1591 = vlaneseq
      %v1592 = vshrl.u32 %v1591, 7
      %v1593 = vsub.s32 %v1590, %v1592
      %v1594 = vrot.slane %v1580, %v1593
      %v1595 = vcombine.high %v1587, %v1587
      %v1596 = vcombine.high %v1594, %v1594
      %v1598 = vunpack.c.l.s4 1966171168
      %v1599 = vunpack.c.0.s8 %v1598
      %v1600 = vlaneseq
      %v1601 = vshrl.u32 %v1600, 7
      %v1602 = vsub.s32 %v1599, %v1601
      %v1603 = vrot.slane %v1587, %v1602
      %v1605 = vunpack.c.l.s4 1966171168
      %v1606 = vunpack.c.0.s8 %v1605
      %v1607 = vlaneseq
      %v1608 = vshrl.u32 %v1607, 7
      %v1609 = vsub.s32 %v1606, %v1608
      %v1610 = vrot.slane %v1594, %v1609
      %v1612 = vunpack.c.l.s4 1966171168
      %v1613 = vunpack.c.0.s8 %v1612
      %v1614 = vlaneseq
      %v1615 = vshrl.u32 %v1614, 7
      %v1616 = vsub.s32 %v1613, %v1615
      %v1617 = vrot.slane %v1595, %v1616
      %v1619 = vunpack.c.l.s4 1966171168
      %v1620 = vunpack.c.0.s8 %v1619
      %v1621 = vlaneseq
      %v1622 = vshrl.u32 %v1621, 7
      %v1623 = vsub.s32 %v1620, %v1622
      %v1624 = vrot.slane %v1596, %v1623
      %v1625 = vcombine.high %v1603, %v1603
      %v1626 = vcombine.high %v1610, %v1610
      %v1627 = vcombine.high %v1617, %v1617
      %v1628 = vcombine.high %v989, %v989
      %v1630 = vunpack.c.l.s4 1966171168
      %v1631 = vunpack.c.0.s8 %v1630
      %v1632 = vlaneseq
      %v1633 = vshrl.u32 %v1632, 7
      %v1634 = vsub.s32 %v1631, %v1633
      %v1635 = vrot.slane %v989, %v1634
      %v1637 = vunpack.c.l.s4 1966171168
      %v1638 = vunpack.c.0.s8 %v1637
      %v1639 = vlaneseq
      %v1640 = vshrl.u32 %v1639, 7
      %v1641 = vsub.s32 %v1638, %v1640
      %v1642 = vrot.slane %v1628, %v1641
      %v1643 = vcombine.high %v1635, %v1635
      %v1644 = vcombine.high %v1642, %v1642
      %v1646 = vunpack.c.l.s4 1966171168
      %v1647 = vunpack.c.0.s8 %v1646
      %v1648 = vlaneseq
      %v1649 = vshrl.u32 %v1648, 7
      %v1650 = vsub.s32 %v1647, %v1649
      %v1651 = vrot.slane %v1635, %v1650
      %v1653 = vunpack.c.l.s4 1966171168
      %v1654 = vunpack.c.0.s8 %v1653
      %v1655 = vlaneseq
      %v1656 = vshrl.u32 %v1655, 7
      %v1657 = vsub.s32 %v1654, %v1656
      %v1658 = vrot.slane %v1642, %v1657
      %v1660 = vunpack.c.l.s4 1966171168
      %v1661 = vunpack.c.0.s8 %v1660
      %v1662 = vlaneseq
      %v1663 = vshrl.u32 %v1662, 7
      %v1664 = vsub.s32 %v1661, %v1663
      %v1665 = vrot.slane %v1643, %v1664
      %v1667 = vunpack.c.l.s4 1966171168
      %v1668 = vunpack.c.0.s8 %v1667
      %v1669 = vlaneseq
      %v1670 = vshrl.u32 %v1669, 7
      %v1671 = vsub.s32 %v1668, %v1670
      %v1672 = vrot.slane %v1644, %v1671
      %v1673 = vcombine.high %v1651, %v1651
      %v1674 = vcombine.high %v1658, %v1658
      %v1675 = vcombine.high %v1665, %v1665
      %v1676 = vld [vmem:[%s2] sm:$0xf]
      %v1677 = vld [vmem:[%s2 + $0x4] sm:$0xf]
      %v1678 = vld [vmem:[%s2 + $0x8] sm:$0xf]
      %v1679 = vld [vmem:[%s2 + $0xc] sm:$0xf]
      %v1680 = vld [vmem:[%s2 + $0x10] sm:$0x3]
      %v1681 = vcombine.low %v1027, %v1041
      %v1682 = vcombine.low %v1049, %v1051
      %v1683 = vcombine.low %v1034, %v1048
      %v1684 = vcombine.low %v1050, %v1075
      %v1686 = vunpack.c.l.s4 1966171168
      %v1687 = vunpack.c.0.s8 %v1686
      %v1688 = vlaneseq
      %v1689 = vshrl.u32 %v1688, 7
      %v1690 = vsub.s32 %v1687, %v1689
      %v1691 = vrot.slane %v1681, %v1690
      %v1693 = vunpack.c.l.s4 1966171168
      %v1694 = vunpack.c.0.s8 %v1693
      %v1695 = vlaneseq
      %v1696 = vshrl.u32 %v1695, 7
      %v1697 = vsub.s32 %v1694, %v1696
      %v1698 = vrot.slane %v1682, %v1697
      %v1700 = vunpack.c.l.s4 1966171168
      %v1701 = vunpack.c.0.s8 %v1700
      %v1702 = vlaneseq
      %v1703 = vshrl.u32 %v1702, 7
      %v1704 = vsub.s32 %v1701, %v1703
      %v1705 = vrot.slane %v1683, %v1704
      %v1707 = vunpack.c.l.s4 1966171168
      %v1708 = vunpack.c.0.s8 %v1707
      %v1709 = vlaneseq
      %v1710 = vshrl.u32 %v1709, 7
      %v1711 = vsub.s32 %v1708, %v1710
      %v1712 = vrot.slane %v1684, %v1711
      %v1713 = vcombine.low %v1691, %v1698
      %v1714 = vcombine.low %v1705, %v1712
      %v1716 = vunpack.c.l.s4 1966171168
      %v1717 = vunpack.c.0.s8 %v1716
      %v1718 = vlaneseq
      %v1719 = vshrl.u32 %v1718, 7
      %v1720 = vsub.s32 %v1717, %v1719
      %v1721 = vrot.slane %v1713, %v1720
      %v1723 = vunpack.c.l.s4 1966171168
      %v1724 = vunpack.c.0.s8 %v1723
      %v1725 = vlaneseq
      %v1726 = vshrl.u32 %v1725, 7
      %v1727 = vsub.s32 %v1724, %v1726
      %v1728 = vrot.slane %v1714, %v1727
      %v1729 = vcombine.low %v1721, %v1728
      %v1730 = vcombine.low %v1089, %v1097
      %v1731 = vcombine.low %v1099, %v1082
      %v1732 = vcombine.low %v1096, %v1098
      %v1733 = vcombine.low %v1123, %v1137
      %v1735 = vunpack.c.l.s4 1966171168
      %v1736 = vunpack.c.0.s8 %v1735
      %v1737 = vlaneseq
      %v1738 = vshrl.u32 %v1737, 7
      %v1739 = vsub.s32 %v1736, %v1738
      %v1740 = vrot.slane %v1730, %v1739
      %v1742 = vunpack.c.l.s4 1966171168
      %v1743 = vunpack.c.0.s8 %v1742
      %v1744 = vlaneseq
      %v1745 = vshrl.u32 %v1744, 7
      %v1746 = vsub.s32 %v1743, %v1745
      %v1747 = vrot.slane %v1731, %v1746
      %v1749 = vunpack.c.l.s4 1966171168
      %v1750 = vunpack.c.0.s8 %v1749
      %v1751 = vlaneseq
      %v1752 = vshrl.u32 %v1751, 7
      %v1753 = vsub.s32 %v1750, %v1752
      %v1754 = vrot.slane %v1732, %v1753
      %v1756 = vunpack.c.l.s4 1966171168
      %v1757 = vunpack.c.0.s8 %v1756
      %v1758 = vlaneseq
      %v1759 = vshrl.u32 %v1758, 7
      %v1760 = vsub.s32 %v1757, %v1759
      %v1761 = vrot.slane %v1733, %v1760
      %v1762 = vcombine.low %v1740, %v1747
      %v1763 = vcombine.low %v1754, %v1761
      %v1765 = vunpack.c.l.s4 1966171168
      %v1766 = vunpack.c.0.s8 %v1765
      %v1767 = vlaneseq
      %v1768 = vshrl.u32 %v1767, 7
      %v1769 = vsub.s32 %v1766, %v1768
      %v1770 = vrot.slane %v1762, %v1769
      %v1772 = vunpack.c.l.s4 1966171168
      %v1773 = vunpack.c.0.s8 %v1772
      %v1774 = vlaneseq
      %v1775 = vshrl.u32 %v1774, 7
      %v1776 = vsub.s32 %v1773, %v1775
      %v1777 = vrot.slane %v1763, %v1776
      %v1778 = vcombine.low %v1770, %v1777
      %v1779 = vcombine.low %v1145, %v1147
      %v1780 = vcombine.low %v1130, %v1144
      %v1781 = vcombine.low %v1146, %v1171
      %v1782 = vcombine.low %v1185, %v1193
      %v1784 = vunpack.c.l.s4 1966171168
      %v1785 = vunpack.c.0.s8 %v1784
      %v1786 = vlaneseq
      %v1787 = vshrl.u32 %v1786, 7
      %v1788 = vsub.s32 %v1785, %v1787
      %v1789 = vrot.slane %v1779, %v1788
      %v1791 = vunpack.c.l.s4 1966171168
      %v1792 = vunpack.c.0.s8 %v1791
      %v1793 = vlaneseq
      %v1794 = vshrl.u32 %v1793, 7
      %v1795 = vsub.s32 %v1792, %v1794
      %v1796 = vrot.slane %v1780, %v1795
      %v1798 = vunpack.c.l.s4 1966171168
      %v1799 = vunpack.c.0.s8 %v1798
      %v1800 = vlaneseq
      %v1801 = vshrl.u32 %v1800, 7
      %v1802 = vsub.s32 %v1799, %v1801
      %v1803 = vrot.slane %v1781, %v1802
      %v1805 = vunpack.c.l.s4 1966171168
      %v1806 = vunpack.c.0.s8 %v1805
      %v1807 = vlaneseq
      %v1808 = vshrl.u32 %v1807, 7
      %v1809 = vsub.s32 %v1806, %v1808
      %v1810 = vrot.slane %v1782, %v1809
      %v1811 = vcombine.low %v1789, %v1796
      %v1812 = vcombine.low %v1803, %v1810
      %v1814 = vunpack.c.l.s4 1966171168
      %v1815 = vunpack.c.0.s8 %v1814
      %v1816 = vlaneseq
      %v1817 = vshrl.u32 %v1816, 7
      %v1818 = vsub.s32 %v1815, %v1817
      %v1819 = vrot.slane %v1811, %v1818
      %v1821 = vunpack.c.l.s4 1966171168
      %v1822 = vunpack.c.0.s8 %v1821
      %v1823 = vlaneseq
      %v1824 = vshrl.u32 %v1823, 7
      %v1825 = vsub.s32 %v1822, %v1824
      %v1826 = vrot.slane %v1812, %v1825
      %v1827 = vcombine.low %v1819, %v1826
      %v1828 = vcombine.low %v1195, %v1178
      %v1829 = vcombine.low %v1192, %v1194
      %v1830 = vcombine.low %v1219, %v1233
      %v1831 = vcombine.low %v1241, %v1243
      %v1833 = vunpack.c.l.s4 1966171168
      %v1834 = vunpack.c.0.s8 %v1833
      %v1835 = vlaneseq
      %v1836 = vshrl.u32 %v1835, 7
      %v1837 = vsub.s32 %v1834, %v1836
      %v1838 = vrot.slane %v1828, %v1837
      %v1840 = vunpack.c.l.s4 1966171168
      %v1841 = vunpack.c.0.s8 %v1840
      %v1842 = vlaneseq
      %v1843 = vshrl.u32 %v1842, 7
      %v1844 = vsub.s32 %v1841, %v1843
      %v1845 = vrot.slane %v1829, %v1844
      %v1847 = vunpack.c.l.s4 1966171168
      %v1848 = vunpack.c.0.s8 %v1847
      %v1849 = vlaneseq
      %v1850 = vshrl.u32 %v1849, 7
      %v1851 = vsub.s32 %v1848, %v1850
      %v1852 = vrot.slane %v1830, %v1851
      %v1854 = vunpack.c.l.s4 1966171168
      %v1855 = vunpack.c.0.s8 %v1854
      %v1856 = vlaneseq
      %v1857 = vshrl.u32 %v1856, 7
      %v1858 = vsub.s32 %v1855, %v1857
      %v1859 = vrot.slane %v1831, %v1858
      %v1860 = vcombine.low %v1838, %v1845
      %v1861 = vcombine.low %v1852, %v1859
      %v1863 = vunpack.c.l.s4 1966171168
      %v1864 = vunpack.c.0.s8 %v1863
      %v1865 = vlaneseq
      %v1866 = vshrl.u32 %v1865, 7
      %v1867 = vsub.s32 %v1864, %v1866
      %v1868 = vrot.slane %v1860, %v1867
      %v1870 = vunpack.c.l.s4 1966171168
      %v1871 = vunpack.c.0.s8 %v1870
      %v1872 = vlaneseq
      %v1873 = vshrl.u32 %v1872, 7
      %v1874 = vsub.s32 %v1871, %v1873
      %v1875 = vrot.slane %v1861, %v1874
      %v1876 = vcombine.low %v1868, %v1875
      %v1877 = vcombine.low %v1226, %v1240
      %v1878 = vcombine.low %v1242, %v1267
      %v1879 = vcombine.low %v1281, %v1289
      %v1880 = vcombine.low %v1291, %v1274
      %v1882 = vunpack.c.l.s4 1966171168
      %v1883 = vunpack.c.0.s8 %v1882
      %v1884 = vlaneseq
      %v1885 = vshrl.u32 %v1884, 7
      %v1886 = vsub.s32 %v1883, %v1885
      %v1887 = vrot.slane %v1877, %v1886
      %v1889 = vunpack.c.l.s4 1966171168
      %v1890 = vunpack.c.0.s8 %v1889
      %v1891 = vlaneseq
      %v1892 = vshrl.u32 %v1891, 7
      %v1893 = vsub.s32 %v1890, %v1892
      %v1894 = vrot.slane %v1878, %v1893
      %v1896 = vunpack.c.l.s4 1966171168
      %v1897 = vunpack.c.0.s8 %v1896
      %v1898 = vlaneseq
      %v1899 = vshrl.u32 %v1898, 7
      %v1900 = vsub.s32 %v1897, %v1899
      %v1901 = vrot.slane %v1879, %v1900
      %v1903 = vunpack.c.l.s4 1966171168
      %v1904 = vunpack.c.0.s8 %v1903
      %v1905 = vlaneseq
      %v1906 = vshrl.u32 %v1905, 7
      %v1907 = vsub.s32 %v1904, %v1906
      %v1908 = vrot.slane %v1880, %v1907
      %v1909 = vcombine.low %v1887, %v1894
      %v1910 = vcombine.low %v1901, %v1908
      %v1912 = vunpack.c.l.s4 1966171168
      %v1913 = vunpack.c.0.s8 %v1912
      %v1914 = vlaneseq
      %v1915 = vshrl.u32 %v1914, 7
      %v1916 = vsub.s32 %v1913, %v1915
      %v1917 = vrot.slane %v1909, %v1916
      %v1919 = vunpack.c.l.s4 1966171168
      %v1920 = vunpack.c.0.s8 %v1919
      %v1921 = vlaneseq
      %v1922 = vshrl.u32 %v1921, 7
      %v1923 = vsub.s32 %v1920, %v1922
      %v1924 = vrot.slane %v1910, %v1923
      %v1925 = vcombine.low %v1917, %v1924
      %v1926 = vcombine.low %v1288, %v1290
      %v1927 = vcombine.low %v1315, %v1329
      %v1928 = vcombine.low %v1337, %v1339
      %v1929 = vcombine.low %v1322, %v1336
      %v1931 = vunpack.c.l.s4 1966171168
      %v1932 = vunpack.c.0.s8 %v1931
      %v1933 = vlaneseq
      %v1934 = vshrl.u32 %v1933, 7
      %v1935 = vsub.s32 %v1932, %v1934
      %v1936 = vrot.slane %v1926, %v1935
      %v1938 = vunpack.c.l.s4 1966171168
      %v1939 = vunpack.c.0.s8 %v1938
      %v1940 = vlaneseq
      %v1941 = vshrl.u32 %v1940, 7
      %v1942 = vsub.s32 %v1939, %v1941
      %v1943 = vrot.slane %v1927, %v1942
      %v1945 = vunpack.c.l.s4 1966171168
      %v1946 = vunpack.c.0.s8 %v1945
      %v1947 = vlaneseq
      %v1948 = vshrl.u32 %v1947, 7
      %v1949 = vsub.s32 %v1946, %v1948
      %v1950 = vrot.slane %v1928, %v1949
      %v1952 = vunpack.c.l.s4 1966171168
      %v1953 = vunpack.c.0.s8 %v1952
      %v1954 = vlaneseq
      %v1955 = vshrl.u32 %v1954, 7
      %v1956 = vsub.s32 %v1953, %v1955
      %v1957 = vrot.slane %v1929, %v1956
      %v1958 = vcombine.low %v1936, %v1943
      %v1959 = vcombine.low %v1950, %v1957
      %v1961 = vunpack.c.l.s4 1966171168
      %v1962 = vunpack.c.0.s8 %v1961
      %v1963 = vlaneseq
      %v1964 = vshrl.u32 %v1963, 7
      %v1965 = vsub.s32 %v1962, %v1964
      %v1966 = vrot.slane %v1958, %v1965
      %v1968 = vunpack.c.l.s4 1966171168
      %v1969 = vunpack.c.0.s8 %v1968
      %v1970 = vlaneseq
      %v1971 = vshrl.u32 %v1970, 7
      %v1972 = vsub.s32 %v1969, %v1971
      %v1973 = vrot.slane %v1959, %v1972
      %v1974 = vcombine.low %v1966, %v1973
      %v1975 = vcombine.low %v1338, %v1363
      %v1976 = vcombine.low %v1377, %v1385
      %v1977 = vcombine.low %v1387, %v1370
      %v1978 = vcombine.low %v1384, %v1386
      %v1980 = vunpack.c.l.s4 1966171168
      %v1981 = vunpack.c.0.s8 %v1980
      %v1982 = vlaneseq
      %v1983 = vshrl.u32 %v1982, 7
      %v1984 = vsub.s32 %v1981, %v1983
      %v1985 = vrot.slane %v1975, %v1984
      %v1987 = vunpack.c.l.s4 1966171168
      %v1988 = vunpack.c.0.s8 %v1987
      %v1989 = vlaneseq
      %v1990 = vshrl.u32 %v1989, 7
      %v1991 = vsub.s32 %v1988, %v1990
      %v1992 = vrot.slane %v1976, %v1991
      %v1994 = vunpack.c.l.s4 1966171168
      %v1995 = vunpack.c.0.s8 %v1994
      %v1996 = vlaneseq
      %v1997 = vshrl.u32 %v1996, 7
      %v1998 = vsub.s32 %v1995, %v1997
      %v1999 = vrot.slane %v1977, %v1998
      %v2001 = vunpack.c.l.s4 1966171168
      %v2002 = vunpack.c.0.s8 %v2001
      %v2003 = vlaneseq
      %v2004 = vshrl.u32 %v2003, 7
      %v2005 = vsub.s32 %v2002, %v2004
      %v2006 = vrot.slane %v1978, %v2005
      %v2007 = vcombine.low %v1985, %v1992
      %v2008 = vcombine.low %v1999, %v2006
      %v2010 = vunpack.c.l.s4 1966171168
      %v2011 = vunpack.c.0.s8 %v2010
      %v2012 = vlaneseq
      %v2013 = vshrl.u32 %v2012, 7
      %v2014 = vsub.s32 %v2011, %v2013
      %v2015 = vrot.slane %v2007, %v2014
      %v2017 = vunpack.c.l.s4 1966171168
      %v2018 = vunpack.c.0.s8 %v2017
      %v2019 = vlaneseq
      %v2020 = vshrl.u32 %v2019, 7
      %v2021 = vsub.s32 %v2018, %v2020
      %v2022 = vrot.slane %v2008, %v2021
      %v2023 = vcombine.low %v2015, %v2022
      %v2024 = vcombine.low %v1411, %v1425
      %v2025 = vcombine.low %v1433, %v1435
      %v2026 = vcombine.low %v1418, %v1432
      %v2027 = vcombine.low %v1434, %v1459
      %v2029 = vunpack.c.l.s4 1966171168
      %v2030 = vunpack.c.0.s8 %v2029
      %v2031 = vlaneseq
      %v2032 = vshrl.u32 %v2031, 7
      %v2033 = vsub.s32 %v2030, %v2032
      %v2034 = vrot.slane %v2024, %v2033
      %v2036 = vunpack.c.l.s4 1966171168
      %v2037 = vunpack.c.0.s8 %v2036
      %v2038 = vlaneseq
      %v2039 = vshrl.u32 %v2038, 7
      %v2040 = vsub.s32 %v2037, %v2039
      %v2041 = vrot.slane %v2025, %v2040
      %v2043 = vunpack.c.l.s4 1966171168
      %v2044 = vunpack.c.0.s8 %v2043
      %v2045 = vlaneseq
      %v2046 = vshrl.u32 %v2045, 7
      %v2047 = vsub.s32 %v2044, %v2046
      %v2048 = vrot.slane %v2026, %v2047
      %v2050 = vunpack.c.l.s4 1966171168
      %v2051 = vunpack.c.0.s8 %v2050
      %v2052 = vlaneseq
      %v2053 = vshrl.u32 %v2052, 7
      %v2054 = vsub.s32 %v2051, %v2053
      %v2055 = vrot.slane %v2027, %v2054
      %v2056 = vcombine.low %v2034, %v2041
      %v2057 = vcombine.low %v2048, %v2055
      %v2059 = vunpack.c.l.s4 1966171168
      %v2060 = vunpack.c.0.s8 %v2059
      %v2061 = vlaneseq
      %v2062 = vshrl.u32 %v2061, 7
      %v2063 = vsub.s32 %v2060, %v2062
      %v2064 = vrot.slane %v2056, %v2063
      %v2066 = vunpack.c.l.s4 1966171168
      %v2067 = vunpack.c.0.s8 %v2066
      %v2068 = vlaneseq
      %v2069 = vshrl.u32 %v2068, 7
      %v2070 = vsub.s32 %v2067, %v2069
      %v2071 = vrot.slane %v2057, %v2070
      %v2072 = vcombine.low %v2064, %v2071
      %v2073 = vcombine.low %v1473, %v1481
      %v2074 = vcombine.low %v1483, %v1466
      %v2075 = vcombine.low %v1480, %v1482
      %v2076 = vcombine.low %v1507, %v1521
      %v2078 = vunpack.c.l.s4 1966171168
      %v2079 = vunpack.c.0.s8 %v2078
      %v2080 = vlaneseq
      %v2081 = vshrl.u32 %v2080, 7
      %v2082 = vsub.s32 %v2079, %v2081
      %v2083 = vrot.slane %v2073, %v2082
      %v2085 = vunpack.c.l.s4 1966171168
      %v2086 = vunpack.c.0.s8 %v2085
      %v2087 = vlaneseq
      %v2088 = vshrl.u32 %v2087, 7
      %v2089 = vsub.s32 %v2086, %v2088
      %v2090 = vrot.slane %v2074, %v2089
      %v2092 = vunpack.c.l.s4 1966171168
      %v2093 = vunpack.c.0.s8 %v2092
      %v2094 = vlaneseq
      %v2095 = vshrl.u32 %v2094, 7
      %v2096 = vsub.s32 %v2093, %v2095
      %v2097 = vrot.slane %v2075, %v2096
      %v2099 = vunpack.c.l.s4 1966171168
      %v2100 = vunpack.c.0.s8 %v2099
      %v2101 = vlaneseq
      %v2102 = vshrl.u32 %v2101, 7
      %v2103 = vsub.s32 %v2100, %v2102
      %v2104 = vrot.slane %v2076, %v2103
      %v2105 = vcombine.low %v2083, %v2090
      %v2106 = vcombine.low %v2097, %v2104
      %v2108 = vunpack.c.l.s4 1966171168
      %v2109 = vunpack.c.0.s8 %v2108
      %v2110 = vlaneseq
      %v2111 = vshrl.u32 %v2110, 7
      %v2112 = vsub.s32 %v2109, %v2111
      %v2113 = vrot.slane %v2105, %v2112
      %v2115 = vunpack.c.l.s4 1966171168
      %v2116 = vunpack.c.0.s8 %v2115
      %v2117 = vlaneseq
      %v2118 = vshrl.u32 %v2117, 7
      %v2119 = vsub.s32 %v2116, %v2118
      %v2120 = vrot.slane %v2106, %v2119
      %v2121 = vcombine.low %v2113, %v2120
      %v2122 = vcombine.low %v1529, %v1531
      %v2123 = vcombine.low %v1514, %v1528
      %v2124 = vcombine.low %v1530, %v1555
      %v2125 = vcombine.low %v1569, %v1577
      %v2127 = vunpack.c.l.s4 1966171168
      %v2128 = vunpack.c.0.s8 %v2127
      %v2129 = vlaneseq
      %v2130 = vshrl.u32 %v2129, 7
      %v2131 = vsub.s32 %v2128, %v2130
      %v2132 = vrot.slane %v2122, %v2131
      %v2134 = vunpack.c.l.s4 1966171168
      %v2135 = vunpack.c.0.s8 %v2134
      %v2136 = vlaneseq
      %v2137 = vshrl.u32 %v2136, 7
      %v2138 = vsub.s32 %v2135, %v2137
      %v2139 = vrot.slane %v2123, %v2138
      %v2141 = vunpack.c.l.s4 1966171168
      %v2142 = vunpack.c.0.s8 %v2141
      %v2143 = vlaneseq
      %v2144 = vshrl.u32 %v2143, 7
      %v2145 = vsub.s32 %v2142, %v2144
      %v2146 = vrot.slane %v2124, %v2145
      %v2148 = vunpack.c.l.s4 1966171168
      %v2149 = vunpack.c.0.s8 %v2148
      %v2150 = vlaneseq
      %v2151 = vshrl.u32 %v2150, 7
      %v2152 = vsub.s32 %v2149, %v2151
      %v2153 = vrot.slane %v2125, %v2152
      %v2154 = vcombine.low %v2132, %v2139
      %v2155 = vcombine.low %v2146, %v2153
      %v2157 = vunpack.c.l.s4 1966171168
      %v2158 = vunpack.c.0.s8 %v2157
      %v2159 = vlaneseq
      %v2160 = vshrl.u32 %v2159, 7
      %v2161 = vsub.s32 %v2158, %v2160
      %v2162 = vrot.slane %v2154, %v2161
      %v2164 = vunpack.c.l.s4 1966171168
      %v2165 = vunpack.c.0.s8 %v2164
      %v2166 = vlaneseq
      %v2167 = vshrl.u32 %v2166, 7
      %v2168 = vsub.s32 %v2165, %v2167
      %v2169 = vrot.slane %v2155, %v2168
      %v2170 = vcombine.low %v2162, %v2169
      %v2171 = vcombine.low %v1579, %v1562
      %v2172 = vcombine.low %v1576, %v1578
      %v2173 = vcombine.low %v1603, %v1617
      %v2174 = vcombine.low %v1625, %v1627
      %v2176 = vunpack.c.l.s4 1966171168
      %v2177 = vunpack.c.0.s8 %v2176
      %v2178 = vlaneseq
      %v2179 = vshrl.u32 %v2178, 7
      %v2180 = vsub.s32 %v2177, %v2179
      %v2181 = vrot.slane %v2171, %v2180
      %v2183 = vunpack.c.l.s4 1966171168
      %v2184 = vunpack.c.0.s8 %v2183
      %v2185 = vlaneseq
      %v2186 = vshrl.u32 %v2185, 7
      %v2187 = vsub.s32 %v2184, %v2186
      %v2188 = vrot.slane %v2172, %v2187
      %v2190 = vunpack.c.l.s4 1966171168
      %v2191 = vunpack.c.0.s8 %v2190
      %v2192 = vlaneseq
      %v2193 = vshrl.u32 %v2192, 7
      %v2194 = vsub.s32 %v2191, %v2193
      %v2195 = vrot.slane %v2173, %v2194
      %v2197 = vunpack.c.l.s4 1966171168
      %v2198 = vunpack.c.0.s8 %v2197
      %v2199 = vlaneseq
      %v2200 = vshrl.u32 %v2199, 7
      %v2201 = vsub.s32 %v2198, %v2200
      %v2202 = vrot.slane %v2174, %v2201
      %v2203 = vcombine.low %v2181, %v2188
      %v2204 = vcombine.low %v2195, %v2202
      %v2206 = vunpack.c.l.s4 1966171168
      %v2207 = vunpack.c.0.s8 %v2206
      %v2208 = vlaneseq
      %v2209 = vshrl.u32 %v2208, 7
      %v2210 = vsub.s32 %v2207, %v2209
      %v2211 = vrot.slane %v2203, %v2210
      %v2213 = vunpack.c.l.s4 1966171168
      %v2214 = vunpack.c.0.s8 %v2213
      %v2215 = vlaneseq
      %v2216 = vshrl.u32 %v2215, 7
      %v2217 = vsub.s32 %v2214, %v2216
      %v2218 = vrot.slane %v2204, %v2217
      %v2219 = vcombine.low %v2211, %v2218
      %v2220 = vcombine.low %v1610, %v1624
      %v2221 = vcombine.low %v1626, %v1651
      %v2222 = vcombine.low %v1665, %v1673
      %v2223 = vcombine.low %v1675, %v1658
      %v2225 = vunpack.c.l.s4 1966171168
      %v2226 = vunpack.c.0.s8 %v2225
      %v2227 = vlaneseq
      %v2228 = vshrl.u32 %v2227, 7
      %v2229 = vsub.s32 %v2226, %v2228
      %v2230 = vrot.slane %v2220, %v2229
      %v2232 = vunpack.c.l.s4 1966171168
      %v2233 = vunpack.c.0.s8 %v2232
      %v2234 = vlaneseq
      %v2235 = vshrl.u32 %v2234, 7
      %v2236 = vsub.s32 %v2233, %v2235
      %v2237 = vrot.slane %v2221, %v2236
      %v2239 = vunpack.c.l.s4 1966171168
      %v2240 = vunpack.c.0.s8 %v2239
      %v2241 = vlaneseq
      %v2242 = vshrl.u32 %v2241, 7
      %v2243 = vsub.s32 %v2240, %v2242
      %v2244 = vrot.slane %v2222, %v2243
      %v2246 = vunpack.c.l.s4 1966171168
      %v2247 = vunpack.c.0.s8 %v2246
      %v2248 = vlaneseq
      %v2249 = vshrl.u32 %v2248, 7
      %v2250 = vsub.s32 %v2247, %v2249
      %v2251 = vrot.slane %v2223, %v2250
      %v2252 = vcombine.low %v2230, %v2237
      %v2253 = vcombine.low %v2244, %v2251
      %v2255 = vunpack.c.l.s4 1966171168
      %v2256 = vunpack.c.0.s8 %v2255
      %v2257 = vlaneseq
      %v2258 = vshrl.u32 %v2257, 7
      %v2259 = vsub.s32 %v2256, %v2258
      %v2260 = vrot.slane %v2252, %v2259
      %v2262 = vunpack.c.l.s4 1966171168
      %v2263 = vunpack.c.0.s8 %v2262
      %v2264 = vlaneseq
      %v2265 = vshrl.u32 %v2264, 7
      %v2266 = vsub.s32 %v2263, %v2265
      %v2267 = vrot.slane %v2253, %v2266
      %v2268 = vcombine.low %v2260, %v2267
      %v2269 = vcombine.low %v1672, %v1674
      %v2271 = vunpack.c.l.s4 1966171168
      %v2272 = vunpack.c.0.s8 %v2271
      %v2273 = vlaneseq
      %v2274 = vshrl.u32 %v2273, 7
      %v2275 = vsub.s32 %v2272, %v2274
      %v2276 = vrot.slane %v2269, %v2275
      %v2278 = vunpack.c.l.s4 1966171168
      %v2279 = vunpack.c.0.s8 %v2278
      %v2280 = vlaneseq
      %v2281 = vshrl.u32 %v2280, 7
      %v2282 = vsub.s32 %v2279, %v2281
      %v2283 = vrot.slane %v2276, %v2282
      %v2289 = vunpack.c.l.b16 %v1676
      %v2290 = vunpack.c.l.b16 %v1677
      %v2291 = vunpack.c.l.b16 %v1678
      %v2292 = vunpack.c.l.b16 %v1679
      %v2293 = vunpack.c.l.b16 %v1680
      %v2294 = vpack.c.b16 %v2290, %v2289
      %v2295 = vpack.c.b16 %v2292, %v2291
      %v2296 = vpack.c.b16 %v2293, %v2293
      %vm2299 = vcmask 293888
      %v2301 = vsel %vm2299, %v1729, 0
      %v2304 = vsel %vm2299, %v1778, 0
      %v2307 = vsel %vm2299, %v1827, 0
      %v2310 = vsel %vm2299, %v1876, 0
      %v2313 = vsel %vm2299, %v1925, 0
      %v2316 = vsel %vm2299, %v1974, 0
      %v2319 = vsel %vm2299, %v2023, 0
      %v2322 = vsel %vm2299, %v2072, 0
      %v2325 = vsel %vm2299, %v2121, 0
      %v2328 = vsel %vm2299, %v2170, 0
      %v2331 = vsel %vm2299, %v2219, 0
      %v2334 = vsel %vm2299, %v2268, 0
      %v2337 = vsel %vm2299, %v2283, 0
      %vm2339 = vcmask 1041408
      %v2341 = vsel %vm2339, %v2296, 0
      %2343 = vmatprep.subr.bf16.mxu0 0
      %2344 = vmatpush1.bf16.msra.mxu0 %v2294
      %2345 = vmatprep.subr.bf16.mxu0 0
      %2346 = vmatpush1.bf16.msra.mxu0 %v2295
      %2347 = vmatprep.subr.bf16.mxu0 0
      %2348 = vmatpush1.bf16.msra.mxu0 %v2341
      %2349 = vmatprep.subr.bf16.mxu0 0
      %2350 = vmatpush1.bf16.msra.mxu0 0
      %2351 = vmatprep.subr.bf16.mxu0 0
      %2352 = vmatpush1.bf16.msra.mxu0 0
      %2353 = vmatprep.subr.bf16.mxu0 0
      %2354 = vmatpush1.bf16.msra.mxu0 0
      %2355 = vmatprep.subr.bf16.mxu0 0
      %2356 = vmatpush1.bf16.msra.mxu0 0
      %2357 = vmatprep.subr.bf16.mxu0 0
      %2358 = vmatpush1.bf16.msra.mxu0 0
      %2359 = vmatprep.subr.bf16.mxu0 0
      %2360 = vmatpush1.bf16.msra.mxu0 0
      %2361 = vmatprep.subr.bf16.mxu0 0
      %2362 = vmatpush1.bf16.msra.mxu0 0
      %2363 = vmatprep.subr.bf16.mxu0 0
      %2364 = vmatpush1.bf16.msra.mxu0 0
      %2365 = vmatprep.subr.bf16.mxu0 0
      %2366 = vmatpush1.bf16.msra.mxu0 0
      %2367 = vmatprep.subr.bf16.mxu0 0
      %2368 = vmatpush1.bf16.msra.mxu0 0
      %2369 = vmatprep.subr.bf16.mxu0 0
      %2370 = vmatpush1.bf16.msra.mxu0 0
      %2371 = vmatprep.subr.bf16.mxu0 0
      %2372 = vmatpush1.bf16.msra.mxu0 0
      %2373 = vmatprep.subr.bf16.mxu0 0
      %2374 = vmatpush1.bf16.msra.mxu0 0
      %2375 = vmatprep.mubr.bf16.mxu0 0
      %2376 = vmatmul.mubr.bf16.gmra.mrb[0].mxu0 %v2301
      %v2377 = vpop.f32.mrb[0].mxu0
      %v2378 = vadd.f32 0.0, %v2377
      %v2379 = vpop.f32.mrb[0].mxu0
      %v2380 = vpop.f32.mrb[0].mxu0
      %v2381 = vadd.f32 0.0, %v2380
      %v2382 = vpop.f32.mrb[0].mxu0
      %2383 = vmatprep.mubr.bf16.mxu0 0
      %2384 = vmatmul.mubr.bf16.gmra.mrb[0].mxu0 %v2304
      %v2385 = vpop.f32.mrb[0].mxu0
      %v2386 = vadd.f32 0.0, %v2385
      %v2387 = vpop.f32.mrb[0].mxu0
      %v2388 = vpop.f32.mrb[0].mxu0
      %v2389 = vadd.f32 0.0, %v2388
      %v2390 = vpop.f32.mrb[0].mxu0
      %2391 = vmatprep.mubr.bf16.mxu0 0
      %2392 = vmatmul.mubr.bf16.gmra.mrb[0].mxu0 %v2307
      %v2393 = vpop.f32.mrb[0].mxu0
      %v2394 = vadd.f32 0.0, %v2393
      %v2395 = vpop.f32.mrb[0].mxu0
      %v2396 = vpop.f32.mrb[0].mxu0
      %v2397 = vadd.f32 0.0, %v2396
      %v2398 = vpop.f32.mrb[0].mxu0
      %2399 = vmatprep.mubr.bf16.mxu0 0
      %2400 = vmatmul.mubr.bf16.gmra.mrb[0].mxu0 %v2310
      %v2401 = vpop.f32.mrb[0].mxu0
      %v2402 = vadd.f32 0.0, %v2401
      %v2403 = vpop.f32.mrb[0].mxu0
      %v2404 = vpop.f32.mrb[0].mxu0
      %v2405 = vadd.f32 0.0, %v2404
      %v2406 = vpop.f32.mrb[0].mxu0
      %2407 = vmatprep.mubr.bf16.mxu0 0
      %2408 = vmatmul.mubr.bf16.gmra.mrb[0].mxu0 %v2313
      %v2409 = vpop.f32.mrb[0].mxu0
      %v2410 = vadd.f32 0.0, %v2409
      %v2411 = vpop.f32.mrb[0].mxu0
      %v2412 = vpop.f32.mrb[0].mxu0
      %v2413 = vadd.f32 0.0, %v2412
      %v2414 = vpop.f32.mrb[0].mxu0
      %2415 = vmatprep.mubr.bf16.mxu0 0
      %2416 = vmatmul.mubr.bf16.gmra.mrb[0].mxu0 %v2316
      %v2417 = vpop.f32.mrb[0].mxu0
      %v2418 = vadd.f32 0.0, %v2417
      %v2419 = vpop.f32.mrb[0].mxu0
      %v2420 = vpop.f32.mrb[0].mxu0
      %v2421 = vadd.f32 0.0, %v2420
      %v2422 = vpop.f32.mrb[0].mxu0
      %2423 = vmatprep.mubr.bf16.mxu0 0
      %2424 = vmatmul.mubr.bf16.gmra.mrb[0].mxu0 %v2319
      %v2425 = vpop.f32.mrb[0].mxu0
      %v2426 = vadd.f32 0.0, %v2425
      %v2427 = vpop.f32.mrb[0].mxu0
      %v2428 = vpop.f32.mrb[0].mxu0
      %v2429 = vadd.f32 0.0, %v2428
      %v2430 = vpop.f32.mrb[0].mxu0
      %2431 = vmatprep.mubr.bf16.mxu0 0
      %2432 = vmatmul.mubr.bf16.gmra.mrb[0].mxu0 %v2322
      %v2433 = vpop.f32.mrb[0].mxu0
      %v2434 = vadd.f32 0.0, %v2433
      %v2435 = vpop.f32.mrb[0].mxu0
      %v2436 = vpop.f32.mrb[0].mxu0
      %v2437 = vadd.f32 0.0, %v2436
      %v2438 = vpop.f32.mrb[0].mxu0
      %2439 = vmatprep.mubr.bf16.mxu0 0
      %2440 = vmatmul.mubr.bf16.gmra.mrb[0].mxu0 %v2325
      %v2441 = vpop.f32.mrb[0].mxu0
      %v2442 = vadd.f32 0.0, %v2441
      %v2443 = vpop.f32.mrb[0].mxu0
      %v2444 = vpop.f32.mrb[0].mxu0
      %v2445 = vadd.f32 0.0, %v2444
      %v2446 = vpop.f32.mrb[0].mxu0
      %2447 = vmatprep.mubr.bf16.mxu0 0
      %2448 = vmatmul.mubr.bf16.gmra.mrb[0].mxu0 %v2328
      %v2449 = vpop.f32.mrb[0].mxu0
      %v2450 = vadd.f32 0.0, %v2449
      %v2451 = vpop.f32.mrb[0].mxu0
      %v2452 = vpop.f32.mrb[0].mxu0
      %v2453 = vadd.f32 0.0, %v2452
      %v2454 = vpop.f32.mrb[0].mxu0
      %2455 = vmatprep.mubr.bf16.mxu0 0
      %2456 = vmatmul.mubr.bf16.gmra.mrb[0].mxu0 %v2331
      %v2457 = vpop.f32.mrb[0].mxu0
      %v2458 = vadd.f32 0.0, %v2457
      %v2459 = vpop.f32.mrb[0].mxu0
      %v2460 = vpop.f32.mrb[0].mxu0
      %v2461 = vadd.f32 0.0, %v2460
      %v2462 = vpop.f32.mrb[0].mxu0
      %2463 = vmatprep.mubr.bf16.mxu0 0
      %2464 = vmatmul.mubr.bf16.gmra.mrb[0].mxu0 %v2334
      %v2465 = vpop.f32.mrb[0].mxu0
      %v2466 = vadd.f32 0.0, %v2465
      %v2467 = vpop.f32.mrb[0].mxu0
      %v2468 = vpop.f32.mrb[0].mxu0
      %v2469 = vadd.f32 0.0, %v2468
      %v2470 = vpop.f32.mrb[0].mxu0
      %2471 = vmatprep.mubr.bf16.mxu0 0
      %2472 = vmatmul.mubr.bf16.gmra.mrb[0].mxu0 %v2337
      %v2473 = vpop.f32.mrb[0].mxu0
      %v2474 = vadd.f32 0.0, %v2473
      %v2475 = vpop.f32.mrb[0].mxu0
      %v2476 = vpop.f32.mrb[0].mxu0
      %v2477 = vpop.f32.mrb[0].mxu0
      %2478 = vdwg.mxu0
      %v2504 = vcombine.high %v2378, %v2378
      %v2506 = vunpack.c.l.s4 1983009808
      %v2507 = vunpack.c.0.s8 %v2506
      %v2508 = vlaneseq
      %v2509 = vshrl.u32 %v2508, 7
      %v2510 = vsub.s32 %v2507, %v2509
      %v2511 = vrot.slane %v2378, %v2510
      %v2513 = vunpack.c.l.s4 1983009808
      %v2514 = vunpack.c.0.s8 %v2513
      %v2515 = vlaneseq
      %v2516 = vshrl.u32 %v2515, 7
      %v2517 = vsub.s32 %v2514, %v2516
      %v2518 = vrot.slane %v2504, %v2517
      %v2519 = vcombine.high %v2511, %v2511
      %v2520 = vcombine.high %v2518, %v2518
      %v2521 = vcombine.high %v2381, %v2381
      %v2523 = vunpack.c.l.s4 1983009808
      %v2524 = vunpack.c.0.s8 %v2523
      %v2525 = vlaneseq
      %v2526 = vshrl.u32 %v2525, 7
      %v2527 = vsub.s32 %v2524, %v2526
      %v2528 = vrot.slane %v2381, %v2527
      %v2530 = vunpack.c.l.s4 1983009808
      %v2531 = vunpack.c.0.s8 %v2530
      %v2532 = vlaneseq
      %v2533 = vshrl.u32 %v2532, 7
      %v2534 = vsub.s32 %v2531, %v2533
      %v2535 = vrot.slane %v2521, %v2534
      %v2536 = vcombine.high %v2528, %v2528
      %v2537 = vcombine.high %v2535, %v2535
      %v2538 = vcombine.high %v2386, %v2386
      %v2540 = vunpack.c.l.s4 1983009808
      %v2541 = vunpack.c.0.s8 %v2540
      %v2542 = vlaneseq
      %v2543 = vshrl.u32 %v2542, 7
      %v2544 = vsub.s32 %v2541, %v2543
      %v2545 = vrot.slane %v2386, %v2544
      %v2547 = vunpack.c.l.s4 1983009808
      %v2548 = vunpack.c.0.s8 %v2547
      %v2549 = vlaneseq
      %v2550 = vshrl.u32 %v2549, 7
      %v2551 = vsub.s32 %v2548, %v2550
      %v2552 = vrot.slane %v2538, %v2551
      %v2553 = vcombine.high %v2545, %v2545
      %v2554 = vcombine.high %v2552, %v2552
      %v2555 = vcombine.high %v2389, %v2389
      %v2557 = vunpack.c.l.s4 1983009808
      %v2558 = vunpack.c.0.s8 %v2557
      %v2559 = vlaneseq
      %v2560 = vshrl.u32 %v2559, 7
      %v2561 = vsub.s32 %v2558, %v2560
      %v2562 = vrot.slane %v2389, %v2561
      %v2564 = vunpack.c.l.s4 1983009808
      %v2565 = vunpack.c.0.s8 %v2564
      %v2566 = vlaneseq
      %v2567 = vshrl.u32 %v2566, 7
      %v2568 = vsub.s32 %v2565, %v2567
      %v2569 = vrot.slane %v2555, %v2568
      %v2570 = vcombine.high %v2562, %v2562
      %v2571 = vcombine.high %v2569, %v2569
      %v2572 = vcombine.high %v2394, %v2394
      %v2574 = vunpack.c.l.s4 1983009808
      %v2575 = vunpack.c.0.s8 %v2574
      %v2576 = vlaneseq
      %v2577 = vshrl.u32 %v2576, 7
      %v2578 = vsub.s32 %v2575, %v2577
      %v2579 = vrot.slane %v2394, %v2578
      %v2581 = vunpack.c.l.s4 1983009808
      %v2582 = vunpack.c.0.s8 %v2581
      %v2583 = vlaneseq
      %v2584 = vshrl.u32 %v2583, 7
      %v2585 = vsub.s32 %v2582, %v2584
      %v2586 = vrot.slane %v2572, %v2585
      %v2587 = vcombine.high %v2579, %v2579
      %v2588 = vcombine.high %v2586, %v2586
      %v2589 = vcombine.high %v2397, %v2397
      %v2591 = vunpack.c.l.s4 1983009808
      %v2592 = vunpack.c.0.s8 %v2591
      %v2593 = vlaneseq
      %v2594 = vshrl.u32 %v2593, 7
      %v2595 = vsub.s32 %v2592, %v2594
      %v2596 = vrot.slane %v2397, %v2595
      %v2598 = vunpack.c.l.s4 1983009808
      %v2599 = vunpack.c.0.s8 %v2598
      %v2600 = vlaneseq
      %v2601 = vshrl.u32 %v2600, 7
      %v2602 = vsub.s32 %v2599, %v2601
      %v2603 = vrot.slane %v2589, %v2602
      %v2604 = vcombine.high %v2596, %v2596
      %v2605 = vcombine.high %v2603, %v2603
      %v2606 = vcombine.high %v2402, %v2402
      %v2608 = vunpack.c.l.s4 1983009808
      %v2609 = vunpack.c.0.s8 %v2608
      %v2610 = vlaneseq
      %v2611 = vshrl.u32 %v2610, 7
      %v2612 = vsub.s32 %v2609, %v2611
      %v2613 = vrot.slane %v2402, %v2612
      %v2615 = vunpack.c.l.s4 1983009808
      %v2616 = vunpack.c.0.s8 %v2615
      %v2617 = vlaneseq
      %v2618 = vshrl.u32 %v2617, 7
      %v2619 = vsub.s32 %v2616, %v2618
      %v2620 = vrot.slane %v2606, %v2619
      %v2621 = vcombine.high %v2613, %v2613
      %v2622 = vcombine.high %v2620, %v2620
      %v2623 = vcombine.high %v2405, %v2405
      %v2625 = vunpack.c.l.s4 1983009808
      %v2626 = vunpack.c.0.s8 %v2625
      %v2627 = vlaneseq
      %v2628 = vshrl.u32 %v2627, 7
      %v2629 = vsub.s32 %v2626, %v2628
      %v2630 = vrot.slane %v2405, %v2629
      %v2632 = vunpack.c.l.s4 1983009808
      %v2633 = vunpack.c.0.s8 %v2632
      %v2634 = vlaneseq
      %v2635 = vshrl.u32 %v2634, 7
      %v2636 = vsub.s32 %v2633, %v2635
      %v2637 = vrot.slane %v2623, %v2636
      %v2638 = vcombine.high %v2630, %v2630
      %v2639 = vcombine.high %v2637, %v2637
      %v2640 = vcombine.high %v2410, %v2410
      %v2642 = vunpack.c.l.s4 1983009808
      %v2643 = vunpack.c.0.s8 %v2642
      %v2644 = vlaneseq
      %v2645 = vshrl.u32 %v2644, 7
      %v2646 = vsub.s32 %v2643, %v2645
      %v2647 = vrot.slane %v2410, %v2646
      %v2649 = vunpack.c.l.s4 1983009808
      %v2650 = vunpack.c.0.s8 %v2649
      %v2651 = vlaneseq
      %v2652 = vshrl.u32 %v2651, 7
      %v2653 = vsub.s32 %v2650, %v2652
      %v2654 = vrot.slane %v2640, %v2653
      %v2655 = vcombine.high %v2647, %v2647
      %v2656 = vcombine.high %v2654, %v2654
      %v2657 = vcombine.high %v2413, %v2413
      %v2659 = vunpack.c.l.s4 1983009808
      %v2660 = vunpack.c.0.s8 %v2659
      %v2661 = vlaneseq
      %v2662 = vshrl.u32 %v2661, 7
      %v2663 = vsub.s32 %v2660, %v2662
      %v2664 = vrot.slane %v2413, %v2663
      %v2666 = vunpack.c.l.s4 1983009808
      %v2667 = vunpack.c.0.s8 %v2666
      %v2668 = vlaneseq
      %v2669 = vshrl.u32 %v2668, 7
      %v2670 = vsub.s32 %v2667, %v2669
      %v2671 = vrot.slane %v2657, %v2670
      %v2672 = vcombine.high %v2664, %v2664
      %v2673 = vcombine.high %v2671, %v2671
      %v2674 = vcombine.high %v2418, %v2418
      %v2676 = vunpack.c.l.s4 1983009808
      %v2677 = vunpack.c.0.s8 %v2676
      %v2678 = vlaneseq
      %v2679 = vshrl.u32 %v2678, 7
      %v2680 = vsub.s32 %v2677, %v2679
      %v2681 = vrot.slane %v2418, %v2680
      %v2683 = vunpack.c.l.s4 1983009808
      %v2684 = vunpack.c.0.s8 %v2683
      %v2685 = vlaneseq
      %v2686 = vshrl.u32 %v2685, 7
      %v2687 = vsub.s32 %v2684, %v2686
      %v2688 = vrot.slane %v2674, %v2687
      %v2689 = vcombine.high %v2681, %v2681
      %v2690 = vcombine.high %v2688, %v2688
      %v2691 = vcombine.high %v2421, %v2421
      %v2693 = vunpack.c.l.s4 1983009808
      %v2694 = vunpack.c.0.s8 %v2693
      %v2695 = vlaneseq
      %v2696 = vshrl.u32 %v2695, 7
      %v2697 = vsub.s32 %v2694, %v2696
      %v2698 = vrot.slane %v2421, %v2697
      %v2700 = vunpack.c.l.s4 1983009808
      %v2701 = vunpack.c.0.s8 %v2700
      %v2702 = vlaneseq
      %v2703 = vshrl.u32 %v2702, 7
      %v2704 = vsub.s32 %v2701, %v2703
      %v2705 = vrot.slane %v2691, %v2704
      %v2706 = vcombine.high %v2698, %v2698
      %v2707 = vcombine.high %v2705, %v2705
      %v2708 = vcombine.high %v2426, %v2426
      %v2710 = vunpack.c.l.s4 1983009808
      %v2711 = vunpack.c.0.s8 %v2710
      %v2712 = vlaneseq
      %v2713 = vshrl.u32 %v2712, 7
      %v2714 = vsub.s32 %v2711, %v2713
      %v2715 = vrot.slane %v2426, %v2714
      %v2717 = vunpack.c.l.s4 1983009808
      %v2718 = vunpack.c.0.s8 %v2717
      %v2719 = vlaneseq
      %v2720 = vshrl.u32 %v2719, 7
      %v2721 = vsub.s32 %v2718, %v2720
      %v2722 = vrot.slane %v2708, %v2721
      %v2723 = vcombine.high %v2715, %v2715
      %v2724 = vcombine.high %v2722, %v2722
      %v2725 = vcombine.high %v2429, %v2429
      %v2727 = vunpack.c.l.s4 1983009808
      %v2728 = vunpack.c.0.s8 %v2727
      %v2729 = vlaneseq
      %v2730 = vshrl.u32 %v2729, 7
      %v2731 = vsub.s32 %v2728, %v2730
      %v2732 = vrot.slane %v2429, %v2731
      %v2734 = vunpack.c.l.s4 1983009808
      %v2735 = vunpack.c.0.s8 %v2734
      %v2736 = vlaneseq
      %v2737 = vshrl.u32 %v2736, 7
      %v2738 = vsub.s32 %v2735, %v2737
      %v2739 = vrot.slane %v2725, %v2738
      %v2740 = vcombine.high %v2732, %v2732
      %v2741 = vcombine.high %v2739, %v2739
      %v2742 = vcombine.high %v2434, %v2434
      %v2744 = vunpack.c.l.s4 1983009808
      %v2745 = vunpack.c.0.s8 %v2744
      %v2746 = vlaneseq
      %v2747 = vshrl.u32 %v2746, 7
      %v2748 = vsub.s32 %v2745, %v2747
      %v2749 = vrot.slane %v2434, %v2748
      %v2751 = vunpack.c.l.s4 1983009808
      %v2752 = vunpack.c.0.s8 %v2751
      %v2753 = vlaneseq
      %v2754 = vshrl.u32 %v2753, 7
      %v2755 = vsub.s32 %v2752, %v2754
      %v2756 = vrot.slane %v2742, %v2755
      %v2757 = vcombine.high %v2749, %v2749
      %v2758 = vcombine.high %v2756, %v2756
      %v2759 = vcombine.high %v2437, %v2437
      %v2761 = vunpack.c.l.s4 1983009808
      %v2762 = vunpack.c.0.s8 %v2761
      %v2763 = vlaneseq
      %v2764 = vshrl.u32 %v2763, 7
      %v2765 = vsub.s32 %v2762, %v2764
      %v2766 = vrot.slane %v2437, %v2765
      %v2768 = vunpack.c.l.s4 1983009808
      %v2769 = vunpack.c.0.s8 %v2768
      %v2770 = vlaneseq
      %v2771 = vshrl.u32 %v2770, 7
      %v2772 = vsub.s32 %v2769, %v2771
      %v2773 = vrot.slane %v2759, %v2772
      %v2774 = vcombine.high %v2766, %v2766
      %v2775 = vcombine.high %v2773, %v2773
      %v2776 = vcombine.high %v2442, %v2442
      %v2778 = vunpack.c.l.s4 1983009808
      %v2779 = vunpack.c.0.s8 %v2778
      %v2780 = vlaneseq
      %v2781 = vshrl.u32 %v2780, 7
      %v2782 = vsub.s32 %v2779, %v2781
      %v2783 = vrot.slane %v2442, %v2782
      %v2785 = vunpack.c.l.s4 1983009808
      %v2786 = vunpack.c.0.s8 %v2785
      %v2787 = vlaneseq
      %v2788 = vshrl.u32 %v2787, 7
      %v2789 = vsub.s32 %v2786, %v2788
      %v2790 = vrot.slane %v2776, %v2789
      %v2791 = vcombine.high %v2783, %v2783
      %v2792 = vcombine.high %v2790, %v2790
      %v2793 = vcombine.high %v2445, %v2445
      %v2795 = vunpack.c.l.s4 1983009808
      %v2796 = vunpack.c.0.s8 %v2795
      %v2797 = vlaneseq
      %v2798 = vshrl.u32 %v2797, 7
      %v2799 = vsub.s32 %v2796, %v2798
      %v2800 = vrot.slane %v2445, %v2799
      %v2802 = vunpack.c.l.s4 1983009808
      %v2803 = vunpack.c.0.s8 %v2802
      %v2804 = vlaneseq
      %v2805 = vshrl.u32 %v2804, 7
      %v2806 = vsub.s32 %v2803, %v2805
      %v2807 = vrot.slane %v2793, %v2806
      %v2808 = vcombine.high %v2800, %v2800
      %v2809 = vcombine.high %v2807, %v2807
      %v2810 = vcombine.high %v2450, %v2450
      %v2812 = vunpack.c.l.s4 1983009808
      %v2813 = vunpack.c.0.s8 %v2812
      %v2814 = vlaneseq
      %v2815 = vshrl.u32 %v2814, 7
      %v2816 = vsub.s32 %v2813, %v2815
      %v2817 = vrot.slane %v2450, %v2816
      %v2819 = vunpack.c.l.s4 1983009808
      %v2820 = vunpack.c.0.s8 %v2819
      %v2821 = vlaneseq
      %v2822 = vshrl.u32 %v2821, 7
      %v2823 = vsub.s32 %v2820, %v2822
      %v2824 = vrot.slane %v2810, %v2823
      %v2825 = vcombine.high %v2817, %v2817
      %v2826 = vcombine.high %v2824, %v2824
      %v2827 = vcombine.high %v2453, %v2453
      %v2829 = vunpack.c.l.s4 1983009808
      %v2830 = vunpack.c.0.s8 %v2829
      %v2831 = vlaneseq
      %v2832 = vshrl.u32 %v2831, 7
      %v2833 = vsub.s32 %v2830, %v2832
      %v2834 = vrot.slane %v2453, %v2833
      %v2836 = vunpack.c.l.s4 1983009808
      %v2837 = vunpack.c.0.s8 %v2836
      %v2838 = vlaneseq
      %v2839 = vshrl.u32 %v2838, 7
      %v2840 = vsub.s32 %v2837, %v2839
      %v2841 = vrot.slane %v2827, %v2840
      %v2842 = vcombine.high %v2834, %v2834
      %v2843 = vcombine.high %v2841, %v2841
      %v2844 = vcombine.high %v2458, %v2458
      %v2846 = vunpack.c.l.s4 1983009808
      %v2847 = vunpack.c.0.s8 %v2846
      %v2848 = vlaneseq
      %v2849 = vshrl.u32 %v2848, 7
      %v2850 = vsub.s32 %v2847, %v2849
      %v2851 = vrot.slane %v2458, %v2850
      %v2853 = vunpack.c.l.s4 1983009808
      %v2854 = vunpack.c.0.s8 %v2853
      %v2855 = vlaneseq
      %v2856 = vshrl.u32 %v2855, 7
      %v2857 = vsub.s32 %v2854, %v2856
      %v2858 = vrot.slane %v2844, %v2857
      %v2859 = vcombine.high %v2851, %v2851
      %v2860 = vcombine.high %v2858, %v2858
      %v2861 = vcombine.high %v2461, %v2461
      %v2863 = vunpack.c.l.s4 1983009808
      %v2864 = vunpack.c.0.s8 %v2863
      %v2865 = vlaneseq
      %v2866 = vshrl.u32 %v2865, 7
      %v2867 = vsub.s32 %v2864, %v2866
      %v2868 = vrot.slane %v2461, %v2867
      %v2870 = vunpack.c.l.s4 1983009808
      %v2871 = vunpack.c.0.s8 %v2870
      %v2872 = vlaneseq
      %v2873 = vshrl.u32 %v2872, 7
      %v2874 = vsub.s32 %v2871, %v2873
      %v2875 = vrot.slane %v2861, %v2874
      %v2876 = vcombine.high %v2868, %v2868
      %v2877 = vcombine.high %v2875, %v2875
      %v2878 = vcombine.high %v2466, %v2466
      %v2880 = vunpack.c.l.s4 1983009808
      %v2881 = vunpack.c.0.s8 %v2880
      %v2882 = vlaneseq
      %v2883 = vshrl.u32 %v2882, 7
      %v2884 = vsub.s32 %v2881, %v2883
      %v2885 = vrot.slane %v2466, %v2884
      %v2887 = vunpack.c.l.s4 1983009808
      %v2888 = vunpack.c.0.s8 %v2887
      %v2889 = vlaneseq
      %v2890 = vshrl.u32 %v2889, 7
      %v2891 = vsub.s32 %v2888, %v2890
      %v2892 = vrot.slane %v2878, %v2891
      %v2893 = vcombine.high %v2885, %v2885
      %v2894 = vcombine.high %v2892, %v2892
      %v2895 = vcombine.high %v2469, %v2469
      %v2897 = vunpack.c.l.s4 1983009808
      %v2898 = vunpack.c.0.s8 %v2897
      %v2899 = vlaneseq
      %v2900 = vshrl.u32 %v2899, 7
      %v2901 = vsub.s32 %v2898, %v2900
      %v2902 = vrot.slane %v2469, %v2901
      %v2904 = vunpack.c.l.s4 1983009808
      %v2905 = vunpack.c.0.s8 %v2904
      %v2906 = vlaneseq
      %v2907 = vshrl.u32 %v2906, 7
      %v2908 = vsub.s32 %v2905, %v2907
      %v2909 = vrot.slane %v2895, %v2908
      %v2910 = vcombine.high %v2902, %v2902
      %v2911 = vcombine.high %v2909, %v2909
      %v2913 = vunpack.c.l.s4 1983009808
      %v2914 = vunpack.c.0.s8 %v2913
      %v2915 = vlaneseq
      %v2916 = vshrl.u32 %v2915, 7
      %v2917 = vsub.s32 %v2914, %v2916
      %v2918 = vrot.slane %v2474, %v2917
      %v2919 = vcombine.high %v2918, %v2918
      %v2920 = vcombine.low %v2511, %v2519
      %v2921 = vcombine.low %v2518, %v2520
      %v2923 = vunpack.c.l.s4 1983009808
      %v2924 = vunpack.c.0.s8 %v2923
      %v2925 = vlaneseq
      %v2926 = vshrl.u32 %v2925, 7
      %v2927 = vsub.s32 %v2924, %v2926
      %v2928 = vrot.slane %v2920, %v2927
      %v2930 = vunpack.c.l.s4 1983009808
      %v2931 = vunpack.c.0.s8 %v2930
      %v2932 = vlaneseq
      %v2933 = vshrl.u32 %v2932, 7
      %v2934 = vsub.s32 %v2931, %v2933
      %v2935 = vrot.slane %v2921, %v2934
      %v2936 = vcombine.low %v2928, %v2935
      %v2937 = vcombine.low %v2528, %v2536
      %v2939 = vunpack.c.l.s4 1983009808
      %v2940 = vunpack.c.0.s8 %v2939
      %v2941 = vlaneseq
      %v2942 = vshrl.u32 %v2941, 7
      %v2943 = vsub.s32 %v2940, %v2942
      %v2944 = vrot.slane %v2937, %v2943
      %v2946 = vunpack.c.l.s4 1983009808
      %v2947 = vunpack.c.0.s8 %v2946
      %v2948 = vlaneseq
      %v2949 = vshrl.u32 %v2948, 7
      %v2950 = vsub.s32 %v2947, %v2949
      %v2951 = vrot.slane %v2535, %v2950
      %v2952 = vcombine.low %v2944, %v2951
      %v2953 = vcombine.low %v2537, %v2545
      %v2954 = vcombine.low %v2553, %v2552
      %v2956 = vunpack.c.l.s4 1983009808
      %v2957 = vunpack.c.0.s8 %v2956
      %v2958 = vlaneseq
      %v2959 = vshrl.u32 %v2958, 7
      %v2960 = vsub.s32 %v2957, %v2959
      %v2961 = vrot.slane %v2953, %v2960
      %v2963 = vunpack.c.l.s4 1983009808
      %v2964 = vunpack.c.0.s8 %v2963
      %v2965 = vlaneseq
      %v2966 = vshrl.u32 %v2965, 7
      %v2967 = vsub.s32 %v2964, %v2966
      %v2968 = vrot.slane %v2954, %v2967
      %v2969 = vcombine.low %v2961, %v2968
      %v2970 = vcombine.low %v2554, %v2562
      %v2972 = vunpack.c.l.s4 1983009808
      %v2973 = vunpack.c.0.s8 %v2972
      %v2974 = vlaneseq
      %v2975 = vshrl.u32 %v2974, 7
      %v2976 = vsub.s32 %v2973, %v2975
      %v2977 = vrot.slane %v2970, %v2976
      %v2979 = vunpack.c.l.s4 1983009808
      %v2980 = vunpack.c.0.s8 %v2979
      %v2981 = vlaneseq
      %v2982 = vshrl.u32 %v2981, 7
      %v2983 = vsub.s32 %v2980, %v2982
      %v2984 = vrot.slane %v2570, %v2983
      %v2985 = vcombine.low %v2977, %v2984
      %v2986 = vcombine.low %v2569, %v2571
      %v2987 = vcombine.low %v2579, %v2587
      %v2989 = vunpack.c.l.s4 1983009808
      %v2990 = vunpack.c.0.s8 %v2989
      %v2991 = vlaneseq
      %v2992 = vshrl.u32 %v2991, 7
      %v2993 = vsub.s32 %v2990, %v2992
      %v2994 = vrot.slane %v2986, %v2993
      %v2996 = vunpack.c.l.s4 1983009808
      %v2997 = vunpack.c.0.s8 %v2996
      %v2998 = vlaneseq
      %v2999 = vshrl.u32 %v2998, 7
      %v3000 = vsub.s32 %v2997, %v2999
      %v3001 = vrot.slane %v2987, %v3000
      %v3002 = vcombine.low %v2994, %v3001
      %v3003 = vcombine.low %v2586, %v2588
      %v3005 = vunpack.c.l.s4 1983009808
      %v3006 = vunpack.c.0.s8 %v3005
      %v3007 = vlaneseq
      %v3008 = vshrl.u32 %v3007, 7
      %v3009 = vsub.s32 %v3006, %v3008
      %v3010 = vrot.slane %v3003, %v3009
      %v3012 = vunpack.c.l.s4 1983009808
      %v3013 = vunpack.c.0.s8 %v3012
      %v3014 = vlaneseq
      %v3015 = vshrl.u32 %v3014, 7
      %v3016 = vsub.s32 %v3013, %v3015
      %v3017 = vrot.slane %v2596, %v3016
      %v3018 = vcombine.low %v3010, %v3017
      %v3019 = vcombine.low %v2604, %v2603
      %v3020 = vcombine.low %v2605, %v2613
      %v3022 = vunpack.c.l.s4 1983009808
      %v3023 = vunpack.c.0.s8 %v3022
      %v3024 = vlaneseq
      %v3025 = vshrl.u32 %v3024, 7
      %v3026 = vsub.s32 %v3023, %v3025
      %v3027 = vrot.slane %v3019, %v3026
      %v3029 = vunpack.c.l.s4 1983009808
      %v3030 = vunpack.c.0.s8 %v3029
      %v3031 = vlaneseq
      %v3032 = vshrl.u32 %v3031, 7
      %v3033 = vsub.s32 %v3030, %v3032
      %v3034 = vrot.slane %v3020, %v3033
      %v3035 = vcombine.low %v3027, %v3034
      %v3036 = vcombine.low %v2621, %v2620
      %v3038 = vunpack.c.l.s4 1983009808
      %v3039 = vunpack.c.0.s8 %v3038
      %v3040 = vlaneseq
      %v3041 = vshrl.u32 %v3040, 7
      %v3042 = vsub.s32 %v3039, %v3041
      %v3043 = vrot.slane %v3036, %v3042
      %v3045 = vunpack.c.l.s4 1983009808
      %v3046 = vunpack.c.0.s8 %v3045
      %v3047 = vlaneseq
      %v3048 = vshrl.u32 %v3047, 7
      %v3049 = vsub.s32 %v3046, %v3048
      %v3050 = vrot.slane %v2622, %v3049
      %v3051 = vcombine.low %v3043, %v3050
      %v3052 = vcombine.low %v2630, %v2638
      %v3053 = vcombine.low %v2637, %v2639
      %v3055 = vunpack.c.l.s4 1983009808
      %v3056 = vunpack.c.0.s8 %v3055
      %v3057 = vlaneseq
      %v3058 = vshrl.u32 %v3057, 7
      %v3059 = vsub.s32 %v3056, %v3058
      %v3060 = vrot.slane %v3052, %v3059
      %v3062 = vunpack.c.l.s4 1983009808
      %v3063 = vunpack.c.0.s8 %v3062
      %v3064 = vlaneseq
      %v3065 = vshrl.u32 %v3064, 7
      %v3066 = vsub.s32 %v3063, %v3065
      %v3067 = vrot.slane %v3053, %v3066
      %v3068 = vcombine.low %v3060, %v3067
      %v3069 = vcombine.low %v2647, %v2655
      %v3071 = vunpack.c.l.s4 1983009808
      %v3072 = vunpack.c.0.s8 %v3071
      %v3073 = vlaneseq
      %v3074 = vshrl.u32 %v3073, 7
      %v3075 = vsub.s32 %v3072, %v3074
      %v3076 = vrot.slane %v3069, %v3075
      %v3078 = vunpack.c.l.s4 1983009808
      %v3079 = vunpack.c.0.s8 %v3078
      %v3080 = vlaneseq
      %v3081 = vshrl.u32 %v3080, 7
      %v3082 = vsub.s32 %v3079, %v3081
      %v3083 = vrot.slane %v2654, %v3082
      %v3084 = vcombine.low %v3076, %v3083
      %v3085 = vcombine.low %v2656, %v2664
      %v3086 = vcombine.low %v2672, %v2671
      %v3088 = vunpack.c.l.s4 1983009808
      %v3089 = vunpack.c.0.s8 %v3088
      %v3090 = vlaneseq
      %v3091 = vshrl.u32 %v3090, 7
      %v3092 = vsub.s32 %v3089, %v3091
      %v3093 = vrot.slane %v3085, %v3092
      %v3095 = vunpack.c.l.s4 1983009808
      %v3096 = vunpack.c.0.s8 %v3095
      %v3097 = vlaneseq
      %v3098 = vshrl.u32 %v3097, 7
      %v3099 = vsub.s32 %v3096, %v3098
      %v3100 = vrot.slane %v3086, %v3099
      %v3101 = vcombine.low %v3093, %v3100
      %v3102 = vcombine.low %v2673, %v2681
      %v3104 = vunpack.c.l.s4 1983009808
      %v3105 = vunpack.c.0.s8 %v3104
      %v3106 = vlaneseq
      %v3107 = vshrl.u32 %v3106, 7
      %v3108 = vsub.s32 %v3105, %v3107
      %v3109 = vrot.slane %v3102, %v3108
      %v3111 = vunpack.c.l.s4 1983009808
      %v3112 = vunpack.c.0.s8 %v3111
      %v3113 = vlaneseq
      %v3114 = vshrl.u32 %v3113, 7
      %v3115 = vsub.s32 %v3112, %v3114
      %v3116 = vrot.slane %v2689, %v3115
      %v3117 = vcombine.low %v3109, %v3116
      %v3118 = vcombine.low %v2688, %v2690
      %v3119 = vcombine.low %v2698, %v2706
      %v3121 = vunpack.c.l.s4 1983009808
      %v3122 = vunpack.c.0.s8 %v3121
      %v3123 = vlaneseq
      %v3124 = vshrl.u32 %v3123, 7
      %v3125 = vsub.s32 %v3122, %v3124
      %v3126 = vrot.slane %v3118, %v3125
      %v3128 = vunpack.c.l.s4 1983009808
      %v3129 = vunpack.c.0.s8 %v3128
      %v3130 = vlaneseq
      %v3131 = vshrl.u32 %v3130, 7
      %v3132 = vsub.s32 %v3129, %v3131
      %v3133 = vrot.slane %v3119, %v3132
      %v3134 = vcombine.low %v3126, %v3133
      %v3135 = vcombine.low %v2705, %v2707
      %v3137 = vunpack.c.l.s4 1983009808
      %v3138 = vunpack.c.0.s8 %v3137
      %v3139 = vlaneseq
      %v3140 = vshrl.u32 %v3139, 7
      %v3141 = vsub.s32 %v3138, %v3140
      %v3142 = vrot.slane %v3135, %v3141
      %v3144 = vunpack.c.l.s4 1983009808
      %v3145 = vunpack.c.0.s8 %v3144
      %v3146 = vlaneseq
      %v3147 = vshrl.u32 %v3146, 7
      %v3148 = vsub.s32 %v3145, %v3147
      %v3149 = vrot.slane %v2715, %v3148
      %v3150 = vcombine.low %v3142, %v3149
      %v3151 = vcombine.low %v2723, %v2722
      %v3152 = vcombine.low %v2724, %v2732
      %v3154 = vunpack.c.l.s4 1983009808
      %v3155 = vunpack.c.0.s8 %v3154
      %v3156 = vlaneseq
      %v3157 = vshrl.u32 %v3156, 7
      %v3158 = vsub.s32 %v3155, %v3157
      %v3159 = vrot.slane %v3151, %v3158
      %v3161 = vunpack.c.l.s4 1983009808
      %v3162 = vunpack.c.0.s8 %v3161
      %v3163 = vlaneseq
      %v3164 = vshrl.u32 %v3163, 7
      %v3165 = vsub.s32 %v3162, %v3164
      %v3166 = vrot.slane %v3152, %v3165
      %v3167 = vcombine.low %v3159, %v3166
      %v3168 = vcombine.low %v2740, %v2739
      %v3170 = vunpack.c.l.s4 1983009808
      %v3171 = vunpack.c.0.s8 %v3170
      %v3172 = vlaneseq
      %v3173 = vshrl.u32 %v3172, 7
      %v3174 = vsub.s32 %v3171, %v3173
      %v3175 = vrot.slane %v3168, %v3174
      %v3177 = vunpack.c.l.s4 1983009808
      %v3178 = vunpack.c.0.s8 %v3177
      %v3179 = vlaneseq
      %v3180 = vshrl.u32 %v3179, 7
      %v3181 = vsub.s32 %v3178, %v3180
      %v3182 = vrot.slane %v2741, %v3181
      %v3183 = vcombine.low %v3175, %v3182
      %v3184 = vcombine.low %v2749, %v2757
      %v3185 = vcombine.low %v2756, %v2758
      %v3187 = vunpack.c.l.s4 1983009808
      %v3188 = vunpack.c.0.s8 %v3187
      %v3189 = vlaneseq
      %v3190 = vshrl.u32 %v3189, 7
      %v3191 = vsub.s32 %v3188, %v3190
      %v3192 = vrot.slane %v3184, %v3191
      %v3194 = vunpack.c.l.s4 1983009808
      %v3195 = vunpack.c.0.s8 %v3194
      %v3196 = vlaneseq
      %v3197 = vshrl.u32 %v3196, 7
      %v3198 = vsub.s32 %v3195, %v3197
      %v3199 = vrot.slane %v3185, %v3198
      %v3200 = vcombine.low %v3192, %v3199
      %v3201 = vcombine.low %v2766, %v2774
      %v3203 = vunpack.c.l.s4 1983009808
      %v3204 = vunpack.c.0.s8 %v3203
      %v3205 = vlaneseq
      %v3206 = vshrl.u32 %v3205, 7
      %v3207 = vsub.s32 %v3204, %v3206
      %v3208 = vrot.slane %v3201, %v3207
      %v3210 = vunpack.c.l.s4 1983009808
      %v3211 = vunpack.c.0.s8 %v3210
      %v3212 = vlaneseq
      %v3213 = vshrl.u32 %v3212, 7
      %v3214 = vsub.s32 %v3211, %v3213
      %v3215 = vrot.slane %v2773, %v3214
      %v3216 = vcombine.low %v3208, %v3215
      %v3217 = vcombine.low %v2775, %v2783
      %v3218 = vcombine.low %v2791, %v2790
      %v3220 = vunpack.c.l.s4 1983009808
      %v3221 = vunpack.c.0.s8 %v3220
      %v3222 = vlaneseq
      %v3223 = vshrl.u32 %v3222, 7
      %v3224 = vsub.s32 %v3221, %v3223
      %v3225 = vrot.slane %v3217, %v3224
      %v3227 = vunpack.c.l.s4 1983009808
      %v3228 = vunpack.c.0.s8 %v3227
      %v3229 = vlaneseq
      %v3230 = vshrl.u32 %v3229, 7
      %v3231 = vsub.s32 %v3228, %v3230
      %v3232 = vrot.slane %v3218, %v3231
      %v3233 = vcombine.low %v3225, %v3232
      %v3234 = vcombine.low %v2792, %v2800
      %v3236 = vunpack.c.l.s4 1983009808
      %v3237 = vunpack.c.0.s8 %v3236
      %v3238 = vlaneseq
      %v3239 = vshrl.u32 %v3238, 7
      %v3240 = vsub.s32 %v3237, %v3239
      %v3241 = vrot.slane %v3234, %v3240
      %v3243 = vunpack.c.l.s4 1983009808
      %v3244 = vunpack.c.0.s8 %v3243
      %v3245 = vlaneseq
      %v3246 = vshrl.u32 %v3245, 7
      %v3247 = vsub.s32 %v3244, %v3246
      %v3248 = vrot.slane %v2808, %v3247
      %v3249 = vcombine.low %v3241, %v3248
      %v3250 = vcombine.low %v2807, %v2809
      %v3251 = vcombine.low %v2817, %v2825
      %v3253 = vunpack.c.l.s4 1983009808
      %v3254 = vunpack.c.0.s8 %v3253
      %v3255 = vlaneseq
      %v3256 = vshrl.u32 %v3255, 7
      %v3257 = vsub.s32 %v3254, %v3256
      %v3258 = vrot.slane %v3250, %v3257
      %v3260 = vunpack.c.l.s4 1983009808
      %v3261 = vunpack.c.0.s8 %v3260
      %v3262 = vlaneseq
      %v3263 = vshrl.u32 %v3262, 7
      %v3264 = vsub.s32 %v3261, %v3263
      %v3265 = vrot.slane %v3251, %v3264
      %v3266 = vcombine.low %v3258, %v3265
      %v3267 = vcombine.low %v2824, %v2826
      %v3269 = vunpack.c.l.s4 1983009808
      %v3270 = vunpack.c.0.s8 %v3269
      %v3271 = vlaneseq
      %v3272 = vshrl.u32 %v3271, 7
      %v3273 = vsub.s32 %v3270, %v3272
      %v3274 = vrot.slane %v3267, %v3273
      %v3276 = vunpack.c.l.s4 1983009808
      %v3277 = vunpack.c.0.s8 %v3276
      %v3278 = vlaneseq
      %v3279 = vshrl.u32 %v3278, 7
      %v3280 = vsub.s32 %v3277, %v3279
      %v3281 = vrot.slane %v2834, %v3280
      %v3282 = vcombine.low %v3274, %v3281
      %v3283 = vcombine.low %v2842, %v2841
      %v3284 = vcombine.low %v2843, %v2851
      %v3286 = vunpack.c.l.s4 1983009808
      %v3287 = vunpack.c.0.s8 %v3286
      %v3288 = vlaneseq
      %v3289 = vshrl.u32 %v3288, 7
      %v3290 = vsub.s32 %v3287, %v3289
      %v3291 = vrot.slane %v3283, %v3290
      %v3293 = vunpack.c.l.s4 1983009808
      %v3294 = vunpack.c.0.s8 %v3293
      %v3295 = vlaneseq
      %v3296 = vshrl.u32 %v3295, 7
      %v3297 = vsub.s32 %v3294, %v3296
      %v3298 = vrot.slane %v3284, %v3297
      %v3299 = vcombine.low %v3291, %v3298
      %v3300 = vcombine.low %v2859, %v2858
      %v3302 = vunpack.c.l.s4 1983009808
      %v3303 = vunpack.c.0.s8 %v3302
      %v3304 = vlaneseq
      %v3305 = vshrl.u32 %v3304, 7
      %v3306 = vsub.s32 %v3303, %v3305
      %v3307 = vrot.slane %v3300, %v3306
      %v3309 = vunpack.c.l.s4 1983009808
      %v3310 = vunpack.c.0.s8 %v3309
      %v3311 = vlaneseq
      %v3312 = vshrl.u32 %v3311, 7
      %v3313 = vsub.s32 %v3310, %v3312
      %v3314 = vrot.slane %v2860, %v3313
      %v3315 = vcombine.low %v3307, %v3314
      %v3316 = vcombine.low %v2868, %v2876
      %v3317 = vcombine.low %v2875, %v2877
      %v3319 = vunpack.c.l.s4 1983009808
      %v3320 = vunpack.c.0.s8 %v3319
      %v3321 = vlaneseq
      %v3322 = vshrl.u32 %v3321, 7
      %v3323 = vsub.s32 %v3320, %v3322
      %v3324 = vrot.slane %v3316, %v3323
      %v3326 = vunpack.c.l.s4 1983009808
      %v3327 = vunpack.c.0.s8 %v3326
      %v3328 = vlaneseq
      %v3329 = vshrl.u32 %v3328, 7
      %v3330 = vsub.s32 %v3327, %v3329
      %v3331 = vrot.slane %v3317, %v3330
      %v3332 = vcombine.low %v3324, %v3331
      %v3333 = vcombine.low %v2885, %v2893
      %v3335 = vunpack.c.l.s4 1983009808
      %v3336 = vunpack.c.0.s8 %v3335
      %v3337 = vlaneseq
      %v3338 = vshrl.u32 %v3337, 7
      %v3339 = vsub.s32 %v3336, %v3338
      %v3340 = vrot.slane %v3333, %v3339
      %v3342 = vunpack.c.l.s4 1983009808
      %v3343 = vunpack.c.0.s8 %v3342
      %v3344 = vlaneseq
      %v3345 = vshrl.u32 %v3344, 7
      %v3346 = vsub.s32 %v3343, %v3345
      %v3347 = vrot.slane %v2892, %v3346
      %v3348 = vcombine.low %v3340, %v3347
      %v3349 = vcombine.low %v2894, %v2902
      %v3350 = vcombine.low %v2910, %v2909
      %v3352 = vunpack.c.l.s4 1983009808
      %v3353 = vunpack.c.0.s8 %v3352
      %v3354 = vlaneseq
      %v3355 = vshrl.u32 %v3354, 7
      %v3356 = vsub.s32 %v3353, %v3355
      %v3357 = vrot.slane %v3349, %v3356
      %v3359 = vunpack.c.l.s4 1983009808
      %v3360 = vunpack.c.0.s8 %v3359
      %v3361 = vlaneseq
      %v3362 = vshrl.u32 %v3361, 7
      %v3363 = vsub.s32 %v3360, %v3362
      %v3364 = vrot.slane %v3350, %v3363
      %v3365 = vcombine.low %v3357, %v3364
      %v3366 = vcombine.low %v2911, %v2918
      %v3368 = vunpack.c.l.s4 1983009808
      %v3369 = vunpack.c.0.s8 %v3368
      %v3370 = vlaneseq
      %v3371 = vshrl.u32 %v3370, 7
      %v3372 = vsub.s32 %v3369, %v3371
      %v3373 = vrot.slane %v3366, %v3372
      %v3375 = vunpack.c.l.s4 1983009808
      %v3376 = vunpack.c.0.s8 %v3375
      %v3377 = vlaneseq
      %v3378 = vshrl.u32 %v3377, 7
      %v3379 = vsub.s32 %v3376, %v3378
      %v3380 = vrot.slane %v2919, %v3379
      %v3381 = vcombine.low %v3373, %v3380
      %3410 = vst [vmem:[%s291] sm:$0xff] %v2936
      %3411 = vst [vmem:[%s291 + $0x8] sm:$0x3f] %v2952
      %3412 = vst [vmem:[%s291 + $0x10] sm:$0xff] %v2969
      %3413 = vst [vmem:[%s291 + $0x18] sm:$0x3f] %v2985
      %3414 = vst [vmem:[%s291 + $0x20] sm:$0xff] %v3002
      %3415 = vst [vmem:[%s291 + $0x28] sm:$0x3f] %v3018
      %3416 = vst [vmem:[%s291 + $0x30] sm:$0xff] %v3035
      %3417 = vst [vmem:[%s291 + $0x38] sm:$0x3f] %v3051
      %3418 = vst [vmem:[%s291 + $0x40] sm:$0xff] %v3068
      %3419 = vst [vmem:[%s291 + $0x48] sm:$0x3f] %v3084
      %3420 = vst [vmem:[%s291 + $0x50] sm:$0xff] %v3101
      %3421 = vst [vmem:[%s291 + $0x58] sm:$0x3f] %v3117
      %3422 = vst [vmem:[%s291 + $0x60] sm:$0xff] %v3134
      %3423 = vst [vmem:[%s291 + $0x68] sm:$0x3f] %v3150
      %3424 = vst [vmem:[%s291 + $0x70] sm:$0xff] %v3167
      %3425 = vst [vmem:[%s291 + $0x78] sm:$0x3f] %v3183
      %3426 = vst [vmem:[%s291 + $0x80] sm:$0xff] %v3200
      %3427 = vst [vmem:[%s291 + $0x88] sm:$0x3f] %v3216
      %3428 = vst [vmem:[%s291 + $0x90] sm:$0xff] %v3233
      %3429 = vst [vmem:[%s291 + $0x98] sm:$0x3f] %v3249
      %3430 = vst [vmem:[%s291 + $0xa0] sm:$0xff] %v3266
      %3431 = vst [vmem:[%s291 + $0xa8] sm:$0x3f] %v3282
      %3432 = vst [vmem:[%s291 + $0xb0] sm:$0xff] %v3299
      %3433 = vst [vmem:[%s291 + $0xb8] sm:$0x3f] %v3315
      %3434 = vst [vmem:[%s291 + $0xc0] sm:$0xff] %v3332
      %3435 = vst [vmem:[%s291 + $0xc8] sm:$0x3f] %v3348
      %3436 = vst [vmem:[%s291 + $0xd0] sm:$0xff] %v3365
      %3437 = vst [vmem:[%s291 + $0xd8] sm:$0x3f] %v3381
      %s3438 = smul.u32 14, %s19
      %p3439 = scmp.lt.s32.totalorder %s18, 1
      %s3440 = scalar_select %p3439, %s18, 1
      %p3441 = scmp.lt.s32.totalorder %s3438, 13
      %s3442 = scalar_select %p3441, %s3438, 13
      %s3443 = smul.addr %s3442, 2
      %s3444 = smul.addr %s3440, 28
      %s3445 = sadd.s32 %s3443, %s3444
      %s3446 = smul.addr %s3445, 8
      %s3447 = scalar_lea.vmem %s3, %s3446
      // Predicated region
      $region33: #{generic_conv_layer_2d.1} parent=31 // pred_check
        %p3448 = pneg %p127
      $region34: #{generic_conv_layer_2d.1} parent=31 // pred_check_branch
        %3450 = sbr.rel (%p3448) target = $region36
      $region35: #{generic_conv_layer_2d.1} parent=31 // pred_region
        %s3451 = smul.u32 14, %s19
      $region36: #{generic_conv_layer_2d.1} parent=31 // pred_fallthru
        _
    $region32: #{generic_conv_layer_2d.1} parent=5 // pred_fallthru
      _
    %p3452 = scmp.le.s32.totalorder 2, %s9
    // Predicated region
    $region37: #{generic_conv_layer_2d.1} parent=5 // pred_check
      %p3453 = pneg %p3452
    $region38: #{generic_conv_layer_2d.1} parent=5 // pred_check_branch
      %3455 = sbr.rel (%p3453) target = $region40
    $region39: #{generic_conv_layer_2d.1} parent=5 // pred_region
      %s3456 = ssub.s32 %s9, 2
      // Predicated region
      $region41: #{generic_conv_layer_2d.1} parent=39 // pred_check
        %p3457 = pneg %p133
      $region42: #{generic_conv_layer_2d.1} parent=39 // pred_check_branch
        %3459 = sbr.rel (%p3457) target = $region44
      $region43: #{generic_conv_layer_2d.1} parent=39 // pred_region
        %s3460 = smul.u32 14, %s21
        %p3461 = scmp.lt.s32.totalorder %s20, 1
        %s3462 = scalar_select %p3461, %s20, 1
        %p3463 = scmp.lt.s32.totalorder %s3460, 13
        %s3464 = scalar_select %p3463, %s3460, 13
        %s3465 = smul.addr %s3464, 2
        %s3466 = smul.addr %s3462, 28
        %s3467 = sadd.s32 %s3465, %s3466
        %s3468 = smul.addr %s3467, 8
        %s3469 = scalar_lea.vmem %s3, %s3468
      $region44: #{generic_conv_layer_2d.1} parent=39 // pred_fallthru
        _
    $region40: #{generic_conv_layer_2d.1} parent=5 // pred_fallthru
      _
  $region6: #{generic_conv_layer_2d.1} parent=0 // loop_footer
    %s13 = sadd.s32 1, %s9
  $region7: #{generic_conv_layer_2d.1} parent=0 // loop_footer_branch
    %8 = sbr.rel target = $region3
  $region8: #{generic_conv_layer_2d.1} parent=0 // loop_exit
    _

</llo_original>
